<compile_context>
chip_gen: v6e
topology: v6e:2x2x1
jax: 0.10.0
libtpu: 0.0.40
codegen_flags: <defaults>
</compile_context>

<pallas_src>
import functools

import jax
import jax.numpy as jnp
from jax.experimental import pallas as pl
from jax.experimental.pallas import tpu as pltpu


# ------------------------------- kernels ------------------------------------


def _sin_emb_kernel(x_ref, freqs_ref, phase_ref, out_ref):
    """Path for size % 128 == 0 (already lane-dense): plain broadcast form.

    x_ref:     (TN, 1)    f32  timesteps (scale already applied)
    freqs_ref: (1, size)  f32  [f_0..f_{h-1}, f_0..f_{h-1}]
    phase_ref: (1, size)  f32  [0]*h + [pi/2]*h     (sin(t + pi/2) == cos(t))
    out_ref:   (TN, size)
    """
    t = x_ref[...] * freqs_ref[...] + phase_ref[...]
    out_ref[...] = jnp.sin(t).astype(out_ref.dtype)


def _sin_emb_kernel_packed(x_ref, expand_ref, freqs_ref, phase_ref, out_ref):
    """Path for size < 128: r original rows packed into one lane-dense output row.

    x_ref:      (TN, r)       f32
    expand_ref: (r, r*size)   f32  0/1 matrix, expand_ref[k, j] = (j // size == k)
    freqs_ref:  (1, r*size)   f32  tile([f.., f..], r)
    phase_ref:  (1, r*size)   f32  tile([0]*h + [pi/2]*h, r)
    out_ref:    (TN, r*size)
    """
    # Lane expansion x_exp[i, j] = x[i, j // size] on the otherwise-idle MXU.
    # The expansion matrix is 0/1, so the product is exact in f32.
    x_exp = jnp.dot(
        x_ref[...],
        expand_ref[...],
        preferred_element_type=jnp.float32,
        precision=jax.lax.Precision.HIGHEST,
    )
    t = x_exp * freqs_ref[...] + phase_ref[...]
    out_ref[...] = jnp.sin(t).astype(out_ref.dtype)


# ------------------------------- helpers ------------------------------------


def _make_freqs(half: int) -> jax.Array:
    # Matches the PyTorch module: exp(-(log(10000)/(half-1)) * arange(half)), f32.
    coeff = jnp.log(jnp.float32(10000.0)) / jnp.float32(half - 1)
    return jnp.exp(-coeff * jnp.arange(half, dtype=jnp.float32))


def _choose_pack_factor(size: int) -> int:
    """Rows packed per output super-row so the store width is lane-dense."""
    if size % 128 == 0:
        return 1
    r = 1
    while (r * size) % 128 != 0 or (r * size) < 512:
        r += 1
    return r


def _choose_row_tile(n_pack: int, width: int) -> int:
    """Row tile (in packed rows): multiple of 16, VMEM-budgeted, >= 4 grid steps
    for big problems so v7x's two TensorCores both get work."""
    bytes_per_row = width * 4
    vmem_budget = 8 * 1024 * 1024                 # output double-buffer budget
    tn = max(16, vmem_budget // (2 * bytes_per_row))
    tn = min(tn, 1024)
    tn = max(16, (tn // 16) * 16)
    if n_pack * bytes_per_row > 512 * 1024:       # big enough to care about v7x
        quarter = -(-n_pack // 4)                 # aim for >= 4 grid steps
        quarter = max(16, ((quarter + 15) // 16) * 16)
        tn = min(tn, quarter)
    if tn >= n_pack:
        return n_pack                             # single full block (allowed)
    return tn


# ------------------------------- wrapper ------------------------------------


@functools.partial(jax.jit, static_argnames=("size", "scale", "out_dtype"))
def sinusoidal_embedding(x: jax.Array, size: int, scale: float = 1.0,
                         out_dtype=jnp.float32) -> jax.Array:
    """Pallas TPU implementation of SinusoidalEmbedding.forward.

    x: (N,) timesteps; returns (N, size) where [:, :size//2] = sin(x*scale*f_k)
    and [:, size//2:] = cos(x*scale*f_k).
    """
    assert x.ndim == 1, "x must be a 1-D batch of timesteps"
    assert size % 2 == 0, "SinusoidalEmbedding requires an even `size`"
    assert size >= 4, "size must be >= 4 (half-1 would be 0 otherwise)"
    half = size // 2
    n = x.shape[0]

    # Apply scale exactly like the reference ((x*scale)*freq rounding order).
    xf = x.astype(jnp.float32) * jnp.float32(scale)

    freqs = _make_freqs(half)                                        # (half,)
    freqs_full = jnp.concatenate([freqs, freqs])                     # (size,)
    phase_full = jnp.concatenate(
        [jnp.zeros((half,), jnp.float32),
         jnp.full((half,), jnp.pi / 2, dtype=jnp.float32)])          # (size,)

    r = _choose_pack_factor(size)
    width = r * size

    n_pack = -(-n // r)                  # packed super-rows
    n_pad = n_pack * r
    if n_pad != n:
        xf = jnp.pad(xf, (0, n_pad - n))  # padded rows produce finite garbage, sliced off
    x2d = xf.reshape(n_pack, r)

    freqs_row = jnp.tile(freqs_full, (r,)).reshape(1, width)
    phase_row = jnp.tile(phase_full, (r,)).reshape(1, width)

    tn = _choose_row_tile(n_pack, width)
    grid = (pl.cdiv(n_pack, tn),)

    if r == 1:
        kernel = _sin_emb_kernel
        in_specs = [
            pl.BlockSpec((tn, 1), lambda i: (i, 0)),        # timesteps
            pl.BlockSpec((1, width), lambda i: (0, 0)),     # freqs (resident)
            pl.BlockSpec((1, width), lambda i: (0, 0)),     # phase (resident)
        ]
        args = (x2d, freqs_row, phase_row)
    else:
        # 0/1 lane-expansion matrix: column j takes x element j // size.
        expand = (jnp.arange(r, dtype=jnp.int32)[:, None]
                  == (jnp.arange(width, dtype=jnp.int32)[None, :] // size)
                  ).astype(jnp.float32)                     # (r, width)
        kernel = _sin_emb_kernel_packed
        in_specs = [
            pl.BlockSpec((tn, r), lambda i: (i, 0)),        # timesteps (packed)
            pl.BlockSpec((r, width), lambda i: (0, 0)),     # expansion matrix
            pl.BlockSpec((1, width), lambda i: (0, 0)),     # freqs (resident)
            pl.BlockSpec((1, width), lambda i: (0, 0)),     # phase (resident)
        ]
        args = (x2d, expand, freqs_row, phase_row)

    out = pl.pallas_call(
        kernel,
        out_shape=jax.ShapeDtypeStruct((n_pack, width), out_dtype),
        grid=grid,
        in_specs=in_specs,
        out_specs=pl.BlockSpec((tn, width), lambda i: (i, 0)),
        compiler_params=pltpu.CompilerParams(
            dimension_semantics=("parallel",),   # row axis shardable across TCs (v7x)
        ),
    )(*args)

    out = out.reshape(n_pad, size)               # metadata-only (contiguous)
    if n_pad != n:
        out = out[:n]
    return out


# ------------------------------ reference -----------------------------------


def _reference(x, size, scale=1.0):
    # Pure-JAX reference mirroring the PyTorch forward exactly.
    x = x.astype(jnp.float32) * scale
    half = size // 2
    emb = jnp.exp(-(jnp.log(10000.0) / (half - 1)) * jnp.arange(half, dtype=jnp.float32))
    emb = x[:, None] * emb[None, :]
    return jnp.concatenate([jnp.sin(emb), jnp.cos(emb)], axis=-1)


if __name__ == "__main__":
    key = jax.random.PRNGKey(0)
    k1, k2 = jax.random.split(key)

    # Config 1: size < 128 -> exercises the lane-packed path (r = 16, width = 512),
    # including the pad-to-multiple-of-r path (120 -> 128 rows, sliced back).
    n1, size1 = 120, 32
    x1 = jax.random.uniform(k1, (n1,), dtype=jnp.float32) * 100.0
    out1 = jax.block_until_ready(sinusoidal_embedding(x1, size=size1, scale=1.0))
    ref1 = _reference(x1, size1, 1.0)
    assert out1.shape == (n1, size1), out1.shape
    assert out1.dtype == jnp.float32, out1.dtype
    # atol 2e-5: cos is computed as sin(t + pi/2); for t <= ~100 the extra argument
    # rounding is bounded by ~4e-6, everything else (freqs, expansion, mul) is exact.
    assert jnp.allclose(out1, ref1, atol=2e-5, rtol=1e-5), \
        float(jnp.max(jnp.abs(out1 - ref1)))

    # Config 2: size a multiple of 128 -> exercises the already-lane-dense path.
    n2, size2 = 64, 128
    x2 = jax.random.uniform(k2, (n2,), dtype=jnp.float32) * 100.0
    out2 = jax.block_until_ready(sinusoidal_embedding(x2, size=size2, scale=1.0))
    ref2 = _reference(x2, size2, 1.0)
    assert out2.shape == (n2, size2), out2.shape
    assert jnp.allclose(out2, ref2, atol=2e-5, rtol=1e-5), \
        float(jnp.max(jnp.abs(out2 - ref2)))

    print("KERNEL_OK")
</pallas_src>

<mosaic_0001>
module attributes {stable_mosaic.version = 11 : i64} {
  func.func @_sin_emb_kernel_packed(%arg0: i32, %arg1: memref<8x16xf32, #tpu.memory_space<vmem>>, %arg2: memref<16x512xf32, #tpu.memory_space<vmem>>, %arg3: memref<1x512xf32, #tpu.memory_space<vmem>>, %arg4: memref<1x512xf32, #tpu.memory_space<vmem>>, %arg5: memref<8x512xf32, #tpu.memory_space<vmem>>) attributes {dimension_semantics = [#tpu.dimension_semantics<parallel>], iteration_bounds = array<i64: 1>, scalar_prefetch = 0 : i64, scratch_operands = 0 : i64, tpu.core_type = #tpu.core_type<tc>, window_params = [{transform_indices = @transform_0, window_bounds = array<i64: 8, 16>}, {pipeline_mode = #tpu.pipeline_mode<synchronous>, transform_indices = @transform_1, window_bounds = array<i64: 16, 512>}, {pipeline_mode = #tpu.pipeline_mode<synchronous>, transform_indices = @transform_2, window_bounds = array<i64: 1, 512>}, {pipeline_mode = #tpu.pipeline_mode<synchronous>, transform_indices = @transform_3, window_bounds = array<i64: 1, 512>}, {transform_indices = @transform_4, window_bounds = array<i64: 8, 512>}]} {
    %c0 = arith.constant 0 : index
    %c0_0 = arith.constant 0 : index
    %0 = vector.load %arg1[%c0, %c0_0] : memref<8x16xf32, #tpu.memory_space<vmem>>, vector<8x16xf32>
    %c0_1 = arith.constant 0 : index
    %c0_2 = arith.constant 0 : index
    %1 = vector.load %arg2[%c0_1, %c0_2] : memref<16x512xf32, #tpu.memory_space<vmem>>, vector<16x512xf32>
    %cst = arith.constant dense<0.000000e+00> : vector<8x512xf32>
    %2 = tpu.matmul %0, %1, %cst {dimension_numbers = #tpu.dot_dimension_numbers<[1], [0], [0], [1], [0, 0, 1, 1], [], []>, precision = #tpu.contract_precision<fp32>} : vector<8x16xf32>, vector<16x512xf32>, vector<8x512xf32> -> vector<8x512xf32>
    %c0_3 = arith.constant 0 : index
    %c0_4 = arith.constant 0 : index
    %3 = vector.load %arg3[%c0_3, %c0_4] : memref<1x512xf32, #tpu.memory_space<vmem>>, vector<1x512xf32>
    %4 = vector.broadcast %3 : vector<1x512xf32> to vector<8x512xf32>
    %5 = arith.mulf %2, %4 : vector<8x512xf32>
    %c0_5 = arith.constant 0 : index
    %c0_6 = arith.constant 0 : index
    %6 = vector.load %arg4[%c0_5, %c0_6] : memref<1x512xf32, #tpu.memory_space<vmem>>, vector<1x512xf32>
    %7 = vector.broadcast %6 : vector<1x512xf32> to vector<8x512xf32>
    %8 = arith.addf %5, %7 : vector<8x512xf32>
    %9 = math.sin %8 : vector<8x512xf32>
    %c0_7 = arith.constant 0 : index
    %c0_8 = arith.constant 0 : index
    %10 = vector.load %arg5[%c0_7, %c0_8] : memref<8x512xf32, #tpu.memory_space<vmem>>, vector<8x512xf32>
    tpu.vector_store %arg5[%c0_7, %c0_8], %9 {strides = array<i32>} : memref<8x512xf32, #tpu.memory_space<vmem>>, vector<8x512xf32>,
    return
  }
  func.func @transform_0(%arg0: i32) -> (i32, i32) {
    %c0_i32 = arith.constant 0 : i32
    %c0_i32_0 = arith.constant 0 : i32
    return %arg0, %c0_i32 : i32, i32
  }
  func.func @transform_1(%arg0: i32) -> (i32, i32) {
    %c0_i32 = arith.constant 0 : i32
    %c0_i32_0 = arith.constant 0 : i32
    %c0_i32_1 = arith.constant 0 : i32
    return %c0_i32, %c0_i32_0 : i32, i32
  }
  func.func @transform_2(%arg0: i32) -> (i32, i32) {
    %c0_i32 = arith.constant 0 : i32
    %c0_i32_0 = arith.constant 0 : i32
    %c0_i32_1 = arith.constant 0 : i32
    return %c0_i32, %c0_i32_0 : i32, i32
  }
  func.func @transform_3(%arg0: i32) -> (i32, i32) {
    %c0_i32 = arith.constant 0 : i32
    %c0_i32_0 = arith.constant 0 : i32
    %c0_i32_1 = arith.constant 0 : i32
    return %c0_i32, %c0_i32_0 : i32, i32
  }
  func.func @transform_4(%arg0: i32) -> (i32, i32) {
    %c0_i32 = arith.constant 0 : i32
    %c0_i32_0 = arith.constant 0 : i32
    return %arg0, %c0_i32 : i32, i32
  }
}

</mosaic_0001>

<llo_original>
// kernel: tile.12
$region0: #{tile.12}
  #allocation0 [shape = 's32[1]{0}', space=sflag, size = 0x4, scoped, tag = 'scoped memory for tile.12']
  %s0 = inlined_call_operand.vmem [shape: f32[32], index: 0, kind: input, shape index: {}]
  %s1 = inlined_call_operand.vmem [shape: f32[16,32], index: 1, kind: output, shape index: {}]
  // Predicated region
  $region2: #{tile.12} parent=0 // pred_check
    _
  $region3: #{tile.12} parent=0 // pred_check_branch
    %3 = sbr.rel (0) target = $region5
  $region4: #{tile.12} parent=0 // pred_region
    _
  $region5: #{tile.12} parent=0 // pred_fallthru
    _
  %v4 = vld [vmem:[%s0] ss:$0 sm:$0xff]
  %5 = vst [vmem:[%s1] sm:$0xff] %v4
  %s6 = scalar_lea.vmem %s1, 8
  %7 = vst [vmem:[%s6] sm:$0xff] %v4

// kernel: tile.13
$region0: #{tile.13}
  %s0 = inlined_call_operand.vmem [shape: f32[16,32], index: 0, kind: input, shape index: {}]
  %s1 = inlined_call_operand.vmem [shape: f32[1,512], index: 1, kind: output, shape index: {}]
  $region1: #{tile.13} parent=0
    #allocation0 [shape = 'u8[16384]{0}', space=vmem, size = 0x4000, scoped, tag = 'scoped mem for output reshape']
    %v2 = vld [vmem:[%s0] ss:$4 sm:$0xf]
    %vm3 = vcmask 261120
    %4 = vst.msk [vmem:[#allocation0] ss:$8 sm:$0xf] %vm3, %v2
    %s5 = scalar_lea.vmem %s0, 3
    %v6 = vld [vmem:[%s5] ss:$4 sm:$0xf]
    %7 = vrot.lane.b32.xlu0 %v6, 96
    %v8 = vpop.permute.xlu0 %7
    %vm9 = vcmask 1048320
    %10 = vst.msk [vmem:[#allocation0] ss:$8 sm:$0xf] %vm9, %v8
    %s11 = scalar_lea.vmem %s0, 2
    %v12 = vld [vmem:[%s11] ss:$4 sm:$0xf]
    %13 = vrot.lane.b32.xlu0 %v12, 64
    %v14 = vpop.permute.xlu0 %13
    %vm15 = vcmask 785920
    %16 = vst.msk [vmem:[#allocation0] ss:$8 sm:$0xf] %vm15, %v14
    %s17 = scalar_lea.vmem %s0, 1
    %v18 = vld [vmem:[%s17] ss:$4 sm:$0xf]
    %19 = vrot.lane.b32.xlu0 %v18, 32
    %v20 = vpop.permute.xlu0 %19
    %vm21 = vcmask 523520
    %22 = vst.msk [vmem:[#allocation0] ss:$8 sm:$0xf] %vm21, %v20
    %s24 = sshll.u32 1, 1
    %s25 = ssub.s32 %s24, 1
    %v27 = vld [vmem:[#allocation0] sm:%s25]
    %s28 = sshll.u32 1, 1
    %s29 = ssub.s32 %s28, 1
    %30 = vst [vmem:[%s1] sm:%s29] %v27
    %s31 = scalar_lea.vmem [#allocation0], 8
    %v32 = vld [vmem:[%s31] sm:%s25]
    %s33 = sshll.u32 1, 1
    %s34 = ssub.s32 %s33, 1
    %s35 = scalar_lea.vmem %s1, 1
    %36 = vst [vmem:[%s35] sm:%s34] %v32
    %s37 = scalar_lea.vmem [#allocation0], 16
    %v38 = vld [vmem:[%s37] sm:%s25]
    %s39 = sshll.u32 1, 1
    %s40 = ssub.s32 %s39, 1
    %s41 = smul.addr 1, 2
    %s42 = scalar_lea.vmem %s1, %s41
    %43 = vst [vmem:[%s42] sm:%s40] %v38
    %s44 = scalar_lea.vmem [#allocation0], 24
    %v45 = vld [vmem:[%s44] sm:%s25]
    %s46 = sshll.u32 1, 1
    %s47 = ssub.s32 %s46, 1
    %s48 = smul.addr 1, 3
    %s49 = scalar_lea.vmem %s1, %s48
    %50 = vst [vmem:[%s49] sm:%s47] %v45

// kernel: sinusoidal_embedding.1
$region0: #{sinusoidal_embedding.1}
  #allocation0 [shape = 'u32[]', space=smem, size = 0x4, offset = 0x4, fixed_abs, tag = 'smem constant byte address 0x4 - core index']
  #allocation1 [shape = 'u32[144,128]{1,0:T(1,128)}', space=vmem, size = 0x12000, scoped, tag = 'internal scratch']
  %s0 = inlined_call_operand.vmem [shape: f32[8,16], index: 0, kind: input, shape index: {}]
  %s1 = inlined_call_operand.vmem [shape: f32[16,512], index: 1, kind: input, shape index: {}]
  %s2 = inlined_call_operand.vmem [shape: f32[1,512], index: 2, kind: input, shape index: {}]
  %s3 = inlined_call_operand.vmem [shape: f32[1,512], index: 3, kind: input, shape index: {}]
  %s4 = inlined_call_operand.vmem [shape: f32[8,512], index: 4, kind: output, shape index: {}]
  %s5 = sld [smem:[#allocation0]]
  $region26: #{sinusoidal_embedding.1} parent=0
    _
  %s7 = ssub.s32 1, %s5
  %s8 = scalar_select 0, %s7, %s5
  // Predicated region
  $region2: #{sinusoidal_embedding.1} parent=0 // pred_check
    _
  $region3: #{sinusoidal_embedding.1} parent=0 // pred_check_branch
    %10 = sbr.rel (0) target = $region5
  $region4: #{sinusoidal_embedding.1} parent=0 // pred_region
    _
  $region5: #{sinusoidal_embedding.1} parent=0 // pred_fallthru
    _
  // Predicated region
  $region6: #{sinusoidal_embedding.1} parent=0 // pred_check
    _
  $region7: #{sinusoidal_embedding.1} parent=0 // pred_check_branch
    %12 = sbr.rel (0) target = $region9
  $region8: #{sinusoidal_embedding.1} parent=0 // pred_region
    _
  $region9: #{sinusoidal_embedding.1} parent=0 // pred_fallthru
    _
  // Predicated region
  $region10: #{sinusoidal_embedding.1} parent=0 // pred_check
    _
  $region11: #{sinusoidal_embedding.1} parent=0 // pred_check_branch
    %14 = sbr.rel (0) target = $region13
  $region12: #{sinusoidal_embedding.1} parent=0 // pred_region
    _
  $region13: #{sinusoidal_embedding.1} parent=0 // pred_fallthru
    _
  // Predicated region
  $region14: #{sinusoidal_embedding.1} parent=0 // pred_check
    _
  $region15: #{sinusoidal_embedding.1} parent=0 // pred_check_branch
    %16 = sbr.rel (0) target = $region17
  $region16: #{sinusoidal_embedding.1} parent=0 // pred_region
    _
  $region17: #{sinusoidal_embedding.1} parent=0 // pred_fallthru
    _
  %v17 = vld [vmem:[%s0] sm:$0xff]
  %v18 = vld [vmem:[%s1] sm:$0xff]
  %v19 = vld [vmem:[%s1 + $0x8] sm:$0xff]
  %v20 = vld [vmem:[%s1 + $0x10] sm:$0xff]
  %v21 = vld [vmem:[%s1 + $0x18] sm:$0xff]
  %v22 = vld [vmem:[%s1 + $0x20] sm:$0xff]
  %v23 = vld [vmem:[%s1 + $0x28] sm:$0xff]
  %v24 = vld [vmem:[%s1 + $0x30] sm:$0xff]
  %v25 = vld [vmem:[%s1 + $0x38] sm:$0xff]
  %vm26 = vcmask 130048
  %v28 = vsel %vm26, %v17, 0
  %30 = vmatprep.subr.mxu0 0.0
  %31 = vmatpush1.msra.mxu0 0.0
  %32 = vmatprep.subr.mxu0 0.0
  %33 = vmatpush1.msra.mxu0 0.0
  %34 = vmatprep.subr.mxu0 0.0
  %35 = vmatpush1.msra.mxu0 0.0
  %36 = vmatprep.subr.mxu0 0.0
  %37 = vmatpush1.msra.mxu0 0.0
  %38 = vmatprep.subr.mxu0 0.0
  %39 = vmatpush1.msra.mxu0 0.0
  %40 = vmatprep.subr.mxu0 0.0
  %41 = vmatpush1.msra.mxu0 0.0
  %42 = vmatprep.subr.mxu0 0.0
  %43 = vmatpush1.msra.mxu0 0.0
  %44 = vmatprep.subr.mxu0 0.0
  %45 = vmatpush1.msra.mxu0 0.0
  %46 = vmatprep.subr.mxu0 0.0
  %47 = vmatpush1.msra.mxu0 0.0
  %48 = vmatprep.subr.mxu0 0.0
  %49 = vmatpush1.msra.mxu0 0.0
  %50 = vmatprep.subr.mxu0 0.0
  %51 = vmatpush1.msra.mxu0 0.0
  %52 = vmatprep.subr.mxu0 0.0
  %53 = vmatpush1.msra.mxu0 0.0
  %54 = vmatprep.subr.mxu0 0.0
  %55 = vmatpush1.msra.mxu0 0.0
  %56 = vmatprep.subr.mxu0 0.0
  %57 = vmatpush1.msra.mxu0 0.0
  %v58 = vand.u32 %v23, 4294901760
  %59 = vmatprep.subr.mxu0 %v58
  %v60 = vand.u32 %v22, 4294901760
  %61 = vmatpush1.msra.mxu0 %v60
  %v62 = vand.u32 %v19, 4294901760
  %63 = vmatprep.subr.mxu0 %v62
  %v64 = vand.u32 %v18, 4294901760
  %65 = vmatpush1.msra.mxu0 %v64
  %66 = vmatprep.subr.mxu0 0.0
  %67 = vmatpush2.msra.mxu0 0.0
  %68 = vmatprep.subr.mxu0 0.0
  %69 = vmatpush2.msra.mxu0 0.0
  %70 = vmatprep.subr.mxu0 0.0
  %71 = vmatpush2.msra.mxu0 0.0
  %72 = vmatprep.subr.mxu0 0.0
  %73 = vmatpush2.msra.mxu0 0.0
  %74 = vmatprep.subr.mxu0 0.0
  %75 = vmatpush2.msra.mxu0 0.0
  %76 = vmatprep.subr.mxu0 0.0
  %77 = vmatpush2.msra.mxu0 0.0
  %78 = vmatprep.subr.mxu0 0.0
  %79 = vmatpush2.msra.mxu0 0.0
  %80 = vmatprep.subr.mxu0 0.0
  %81 = vmatpush2.msra.mxu0 0.0
  %82 = vmatprep.subr.mxu0 0.0
  %83 = vmatpush2.msra.mxu0 0.0
  %84 = vmatprep.subr.mxu0 0.0
  %85 = vmatpush2.msra.mxu0 0.0
  %86 = vmatprep.subr.mxu0 0.0
  %87 = vmatpush2.msra.mxu0 0.0
  %88 = vmatprep.subr.mxu0 0.0
  %89 = vmatpush2.msra.mxu0 0.0
  %90 = vmatprep.subr.mxu0 0.0
  %91 = vmatpush2.msra.mxu0 0.0
  %92 = vmatprep.subr.mxu0 0.0
  %93 = vmatpush2.msra.mxu0 0.0
  %94 = vmatprep.subr.mxu0 0.0
  %95 = vmatpush2.msra.mxu0 0.0
  %96 = vmatprep.subr.mxu0 0.0
  %97 = vmatpush2.msra.mxu0 0.0
  %98 = vmatprep.mubr.f32.mxu0 0.0
  %v99 = vand.u32 %v28, 4294901760
  %v100 = vsub.f32 %v28, %v99
  %v101 = vand.u32 %v100, 4294901760
  %v102 = vsub.f32 %v100, %v101
  %v103 = vand.u32 %v102, 4294901760
  %104 = vmatmul.mubr.f32.gmra.mxu0 %v103
  %v105 = vpop.f32.mrf.mxu0
  %v106 = vadd.f32 0.0, %v105
  %v107 = vpop.f32.mrf.mxu0
  %v108 = vadd.f32 0.0, %v107
  %109 = vdwg.mxu0
  %110 = vmatprep.subr.mxu0 0.0
  %111 = vmatpush1.msra.mxu0 0.0
  %112 = vmatprep.subr.mxu0 0.0
  %113 = vmatpush1.msra.mxu0 0.0
  %114 = vmatprep.subr.mxu0 0.0
  %115 = vmatpush1.msra.mxu0 0.0
  %116 = vmatprep.subr.mxu0 0.0
  %117 = vmatpush1.msra.mxu0 0.0
  %118 = vmatprep.subr.mxu0 0.0
  %119 = vmatpush1.msra.mxu0 0.0
  %120 = vmatprep.subr.mxu0 0.0
  %121 = vmatpush1.msra.mxu0 0.0
  %122 = vmatprep.subr.mxu0 0.0
  %123 = vmatpush1.msra.mxu0 0.0
  %124 = vmatprep.subr.mxu0 0.0
  %125 = vmatpush1.msra.mxu0 0.0
  %126 = vmatprep.subr.mxu0 0.0
  %127 = vmatpush1.msra.mxu0 0.0
  %128 = vmatprep.subr.mxu0 0.0
  %129 = vmatpush1.msra.mxu0 0.0
  %130 = vmatprep.subr.mxu0 0.0
  %131 = vmatpush1.msra.mxu0 0.0
  %132 = vmatprep.subr.mxu0 0.0
  %133 = vmatpush1.msra.mxu0 0.0
  %134 = vmatprep.subr.mxu0 0.0
  %135 = vmatpush1.msra.mxu0 0.0
  %136 = vmatprep.subr.mxu0 0.0
  %137 = vmatpush1.msra.mxu0 0.0
  %v138 = vand.u32 %v23, 4294901760
  %v139 = vsub.f32 %v23, %v138
  %v140 = vand.u32 %v139, 4294901760
  %v141 = vsub.f32 %v139, %v140
  %v142 = vand.u32 %v141, 4294901760
  %143 = vmatprep.subr.mxu0 %v142
  %v144 = vand.u32 %v22, 4294901760
  %v145 = vsub.f32 %v22, %v144
  %v146 = vand.u32 %v145, 4294901760
  %v147 = vsub.f32 %v145, %v146
  %v148 = vand.u32 %v147, 4294901760
  %149 = vmatpush1.msra.mxu0 %v148
  %v150 = vand.u32 %v19, 4294901760
  %v151 = vsub.f32 %v19, %v150
  %v152 = vand.u32 %v151, 4294901760
  %v153 = vsub.f32 %v151, %v152
  %v154 = vand.u32 %v153, 4294901760
  %155 = vmatprep.subr.mxu0 %v154
  %v156 = vand.u32 %v18, 4294901760
  %v157 = vsub.f32 %v18, %v156
  %v158 = vand.u32 %v157, 4294901760
  %v159 = vsub.f32 %v157, %v158
  %v160 = vand.u32 %v159, 4294901760
  %161 = vmatpush1.msra.mxu0 %v160
  %162 = vmatprep.subr.mxu0 0.0
  %163 = vmatpush2.msra.mxu0 0.0
  %164 = vmatprep.subr.mxu0 0.0
  %165 = vmatpush2.msra.mxu0 0.0
  %166 = vmatprep.subr.mxu0 0.0
  %167 = vmatpush2.msra.mxu0 0.0
  %168 = vmatprep.subr.mxu0 0.0
  %169 = vmatpush2.msra.mxu0 0.0
  %170 = vmatprep.subr.mxu0 0.0
  %171 = vmatpush2.msra.mxu0 0.0
  %172 = vmatprep.subr.mxu0 0.0
  %173 = vmatpush2.msra.mxu0 0.0
  %174 = vmatprep.subr.mxu0 0.0
  %175 = vmatpush2.msra.mxu0 0.0
  %176 = vmatprep.subr.mxu0 0.0
  %177 = vmatpush2.msra.mxu0 0.0
  %178 = vmatprep.subr.mxu0 0.0
  %179 = vmatpush2.msra.mxu0 0.0
  %180 = vmatprep.subr.mxu0 0.0
  %181 = vmatpush2.msra.mxu0 0.0
  %182 = vmatprep.subr.mxu0 0.0
  %183 = vmatpush2.msra.mxu0 0.0
  %184 = vmatprep.subr.mxu0 0.0
  %185 = vmatpush2.msra.mxu0 0.0
  %186 = vmatprep.subr.mxu0 0.0
  %187 = vmatpush2.msra.mxu0 0.0
  %188 = vmatprep.subr.mxu0 0.0
  %189 = vmatpush2.msra.mxu0 0.0
  %190 = vmatprep.subr.mxu0 0.0
  %191 = vmatpush2.msra.mxu0 0.0
  %192 = vmatprep.subr.mxu0 0.0
  %193 = vmatpush2.msra.mxu0 0.0
  %194 = vmatprep.mubr.f32.mxu0 0.0
  %v195 = vand.u32 %v28, 4294901760
  %196 = vmatmul.mubr.f32.gmra.mxu0 %v195
  %v197 = vpop.f32.mrf.mxu0
  %v198 = vadd.f32 %v106, %v197
  %v199 = vpop.f32.mrf.mxu0
  %v200 = vadd.f32 %v108, %v199
  %201 = vdwg.mxu0
  %202 = vmatprep.subr.mxu0 0.0
  %203 = vmatpush1.msra.mxu0 0.0
  %204 = vmatprep.subr.mxu0 0.0
  %205 = vmatpush1.msra.mxu0 0.0
  %206 = vmatprep.subr.mxu0 0.0
  %207 = vmatpush1.msra.mxu0 0.0
  %208 = vmatprep.subr.mxu0 0.0
  %209 = vmatpush1.msra.mxu0 0.0
  %210 = vmatprep.subr.mxu0 0.0
  %211 = vmatpush1.msra.mxu0 0.0
  %212 = vmatprep.subr.mxu0 0.0
  %213 = vmatpush1.msra.mxu0 0.0
  %214 = vmatprep.subr.mxu0 0.0
  %215 = vmatpush1.msra.mxu0 0.0
  %216 = vmatprep.subr.mxu0 0.0
  %217 = vmatpush1.msra.mxu0 0.0
  %218 = vmatprep.subr.mxu0 0.0
  %219 = vmatpush1.msra.mxu0 0.0
  %220 = vmatprep.subr.mxu0 0.0
  %221 = vmatpush1.msra.mxu0 0.0
  %222 = vmatprep.subr.mxu0 0.0
  %223 = vmatpush1.msra.mxu0 0.0
  %224 = vmatprep.subr.mxu0 0.0
  %225 = vmatpush1.msra.mxu0 0.0
  %226 = vmatprep.subr.mxu0 0.0
  %227 = vmatpush1.msra.mxu0 0.0
  %228 = vmatprep.subr.mxu0 0.0
  %229 = vmatpush1.msra.mxu0 0.0
  %v230 = vand.u32 %v23, 4294901760
  %v231 = vsub.f32 %v23, %v230
  %232 = vmatprep.subr.mxu0 %v231
  %v233 = vand.u32 %v22, 4294901760
  %v234 = vsub.f32 %v22, %v233
  %235 = vmatpush1.msra.mxu0 %v234
  %v236 = vand.u32 %v19, 4294901760
  %v237 = vsub.f32 %v19, %v236
  %238 = vmatprep.subr.mxu0 %v237
  %v239 = vand.u32 %v18, 4294901760
  %v240 = vsub.f32 %v18, %v239
  %241 = vmatpush1.msra.mxu0 %v240
  %242 = vmatprep.subr.mxu0 0.0
  %243 = vmatpush2.msra.mxu0 0.0
  %244 = vmatprep.subr.mxu0 0.0
  %245 = vmatpush2.msra.mxu0 0.0
  %246 = vmatprep.subr.mxu0 0.0
  %247 = vmatpush2.msra.mxu0 0.0
  %248 = vmatprep.subr.mxu0 0.0
  %249 = vmatpush2.msra.mxu0 0.0
  %250 = vmatprep.subr.mxu0 0.0
  %251 = vmatpush2.msra.mxu0 0.0
  %252 = vmatprep.subr.mxu0 0.0
  %253 = vmatpush2.msra.mxu0 0.0
  %254 = vmatprep.subr.mxu0 0.0
  %255 = vmatpush2.msra.mxu0 0.0
  %256 = vmatprep.subr.mxu0 0.0
  %257 = vmatpush2.msra.mxu0 0.0
  %258 = vmatprep.subr.mxu0 0.0
  %259 = vmatpush2.msra.mxu0 0.0
  %260 = vmatprep.subr.mxu0 0.0
  %261 = vmatpush2.msra.mxu0 0.0
  %262 = vmatprep.subr.mxu0 0.0
  %263 = vmatpush2.msra.mxu0 0.0
  %264 = vmatprep.subr.mxu0 0.0
  %265 = vmatpush2.msra.mxu0 0.0
  %266 = vmatprep.subr.mxu0 0.0
  %267 = vmatpush2.msra.mxu0 0.0
  %268 = vmatprep.subr.mxu0 0.0
  %269 = vmatpush2.msra.mxu0 0.0
  %270 = vmatprep.subr.mxu0 0.0
  %271 = vmatpush2.msra.mxu0 0.0
  %272 = vmatprep.subr.mxu0 0.0
  %273 = vmatpush2.msra.mxu0 0.0
  %274 = vmatprep.mubr.f32.mxu0 0.0
  %v275 = vand.u32 %v28, 4294901760
  %v276 = vsub.f32 %v28, %v275
  %277 = vmatmul.mubr.f32.gmra.mxu0 %v276
  %v278 = vpop.f32.mrf.mxu0
  %v279 = vadd.f32 %v198, %v278
  %v280 = vpop.f32.mrf.mxu0
  %v281 = vadd.f32 %v200, %v280
  %282 = vdwg.mxu0
  %283 = vmatprep.subr.mxu0 0.0
  %284 = vmatpush1.msra.mxu0 0.0
  %285 = vmatprep.subr.mxu0 0.0
  %286 = vmatpush1.msra.mxu0 0.0
  %287 = vmatprep.subr.mxu0 0.0
  %288 = vmatpush1.msra.mxu0 0.0
  %289 = vmatprep.subr.mxu0 0.0
  %290 = vmatpush1.msra.mxu0 0.0
  %291 = vmatprep.subr.mxu0 0.0
  %292 = vmatpush1.msra.mxu0 0.0
  %293 = vmatprep.subr.mxu0 0.0
  %294 = vmatpush1.msra.mxu0 0.0
  %295 = vmatprep.subr.mxu0 0.0
  %296 = vmatpush1.msra.mxu0 0.0
  %297 = vmatprep.subr.mxu0 0.0
  %298 = vmatpush1.msra.mxu0 0.0
  %299 = vmatprep.subr.mxu0 0.0
  %300 = vmatpush1.msra.mxu0 0.0
  %301 = vmatprep.subr.mxu0 0.0
  %302 = vmatpush1.msra.mxu0 0.0
  %303 = vmatprep.subr.mxu0 0.0
  %304 = vmatpush1.msra.mxu0 0.0
  %305 = vmatprep.subr.mxu0 0.0
  %306 = vmatpush1.msra.mxu0 0.0
  %307 = vmatprep.subr.mxu0 0.0
  %308 = vmatpush1.msra.mxu0 0.0
  %309 = vmatprep.subr.mxu0 0.0
  %310 = vmatpush1.msra.mxu0 0.0
  %v311 = vand.u32 %v23, 4294901760
  %312 = vmatprep.subr.mxu0 %v311
  %v313 = vand.u32 %v22, 4294901760
  %314 = vmatpush1.msra.mxu0 %v313
  %v315 = vand.u32 %v19, 4294901760
  %316 = vmatprep.subr.mxu0 %v315
  %v317 = vand.u32 %v18, 4294901760
  %318 = vmatpush1.msra.mxu0 %v317
  %319 = vmatprep.subr.mxu0 0.0
  %320 = vmatpush2.msra.mxu0 0.0
  %321 = vmatprep.subr.mxu0 0.0
  %322 = vmatpush2.msra.mxu0 0.0
  %323 = vmatprep.subr.mxu0 0.0
  %324 = vmatpush2.msra.mxu0 0.0
  %325 = vmatprep.subr.mxu0 0.0
  %326 = vmatpush2.msra.mxu0 0.0
  %327 = vmatprep.subr.mxu0 0.0
  %328 = vmatpush2.msra.mxu0 0.0
  %329 = vmatprep.subr.mxu0 0.0
  %330 = vmatpush2.msra.mxu0 0.0
  %331 = vmatprep.subr.mxu0 0.0
  %332 = vmatpush2.msra.mxu0 0.0
  %333 = vmatprep.subr.mxu0 0.0
  %334 = vmatpush2.msra.mxu0 0.0
  %335 = vmatprep.subr.mxu0 0.0
  %336 = vmatpush2.msra.mxu0 0.0
  %337 = vmatprep.subr.mxu0 0.0
  %338 = vmatpush2.msra.mxu0 0.0
  %339 = vmatprep.subr.mxu0 0.0
  %340 = vmatpush2.msra.mxu0 0.0
  %341 = vmatprep.subr.mxu0 0.0
  %342 = vmatpush2.msra.mxu0 0.0
  %343 = vmatprep.subr.mxu0 0.0
  %344 = vmatpush2.msra.mxu0 0.0
  %345 = vmatprep.subr.mxu0 0.0
  %346 = vmatpush2.msra.mxu0 0.0
  %347 = vmatprep.subr.mxu0 0.0
  %348 = vmatpush2.msra.mxu0 0.0
  %349 = vmatprep.subr.mxu0 0.0
  %350 = vmatpush2.msra.mxu0 0.0
  %351 = vmatprep.mubr.f32.mxu0 0.0
  %v352 = vand.u32 %v28, 4294901760
  %v353 = vsub.f32 %v28, %v352
  %v354 = vand.u32 %v353, 4294901760
  %355 = vmatmul.mubr.f32.gmra.mxu0 %v354
  %v356 = vpop.f32.mrf.mxu0
  %v357 = vadd.f32 %v279, %v356
  %v358 = vpop.f32.mrf.mxu0
  %v359 = vadd.f32 %v281, %v358
  %360 = vdwg.mxu0
  %361 = vmatprep.subr.mxu0 0.0
  %362 = vmatpush1.msra.mxu0 0.0
  %363 = vmatprep.subr.mxu0 0.0
  %364 = vmatpush1.msra.mxu0 0.0
  %365 = vmatprep.subr.mxu0 0.0
  %366 = vmatpush1.msra.mxu0 0.0
  %367 = vmatprep.subr.mxu0 0.0
  %368 = vmatpush1.msra.mxu0 0.0
  %369 = vmatprep.subr.mxu0 0.0
  %370 = vmatpush1.msra.mxu0 0.0
  %371 = vmatprep.subr.mxu0 0.0
  %372 = vmatpush1.msra.mxu0 0.0
  %373 = vmatprep.subr.mxu0 0.0
  %374 = vmatpush1.msra.mxu0 0.0
  %375 = vmatprep.subr.mxu0 0.0
  %376 = vmatpush1.msra.mxu0 0.0
  %377 = vmatprep.subr.mxu0 0.0
  %378 = vmatpush1.msra.mxu0 0.0
  %379 = vmatprep.subr.mxu0 0.0
  %380 = vmatpush1.msra.mxu0 0.0
  %381 = vmatprep.subr.mxu0 0.0
  %382 = vmatpush1.msra.mxu0 0.0
  %383 = vmatprep.subr.mxu0 0.0
  %384 = vmatpush1.msra.mxu0 0.0
  %385 = vmatprep.subr.mxu0 0.0
  %386 = vmatpush1.msra.mxu0 0.0
  %387 = vmatprep.subr.mxu0 0.0
  %388 = vmatpush1.msra.mxu0 0.0
  %v389 = vand.u32 %v23, 4294901760
  %v390 = vsub.f32 %v23, %v389
  %v391 = vand.u32 %v390, 4294901760
  %392 = vmatprep.subr.mxu0 %v391
  %v393 = vand.u32 %v22, 4294901760
  %v394 = vsub.f32 %v22, %v393
  %v395 = vand.u32 %v394, 4294901760
  %396 = vmatpush1.msra.mxu0 %v395
  %v397 = vand.u32 %v19, 4294901760
  %v398 = vsub.f32 %v19, %v397
  %v399 = vand.u32 %v398, 4294901760
  %400 = vmatprep.subr.mxu0 %v399
  %v401 = vand.u32 %v18, 4294901760
  %v402 = vsub.f32 %v18, %v401
  %v403 = vand.u32 %v402, 4294901760
  %404 = vmatpush1.msra.mxu0 %v403
  %405 = vmatprep.subr.mxu0 0.0
  %406 = vmatpush2.msra.mxu0 0.0
  %407 = vmatprep.subr.mxu0 0.0
  %408 = vmatpush2.msra.mxu0 0.0
  %409 = vmatprep.subr.mxu0 0.0
  %410 = vmatpush2.msra.mxu0 0.0
  %411 = vmatprep.subr.mxu0 0.0
  %412 = vmatpush2.msra.mxu0 0.0
  %413 = vmatprep.subr.mxu0 0.0
  %414 = vmatpush2.msra.mxu0 0.0
  %415 = vmatprep.subr.mxu0 0.0
  %416 = vmatpush2.msra.mxu0 0.0
  %417 = vmatprep.subr.mxu0 0.0
  %418 = vmatpush2.msra.mxu0 0.0
  %419 = vmatprep.subr.mxu0 0.0
  %420 = vmatpush2.msra.mxu0 0.0
  %421 = vmatprep.subr.mxu0 0.0
  %422 = vmatpush2.msra.mxu0 0.0
  %423 = vmatprep.subr.mxu0 0.0
  %424 = vmatpush2.msra.mxu0 0.0
  %425 = vmatprep.subr.mxu0 0.0
  %426 = vmatpush2.msra.mxu0 0.0
  %427 = vmatprep.subr.mxu0 0.0
  %428 = vmatpush2.msra.mxu0 0.0
  %429 = vmatprep.subr.mxu0 0.0
  %430 = vmatpush2.msra.mxu0 0.0
  %431 = vmatprep.subr.mxu0 0.0
  %432 = vmatpush2.msra.mxu0 0.0
  %433 = vmatprep.subr.mxu0 0.0
  %434 = vmatpush2.msra.mxu0 0.0
  %435 = vmatprep.subr.mxu0 0.0
  %436 = vmatpush2.msra.mxu0 0.0
  %437 = vmatprep.mubr.f32.mxu0 0.0
  %v438 = vand.u32 %v28, 4294901760
  %439 = vmatmul.mubr.f32.gmra.mxu0 %v438
  %v440 = vpop.f32.mrf.mxu0
  %v441 = vadd.f32 %v357, %v440
  %v442 = vpop.f32.mrf.mxu0
  %v443 = vadd.f32 %v359, %v442
  %444 = vdwg.mxu0
  %445 = vmatprep.subr.mxu0 0.0
  %446 = vmatpush1.msra.mxu0 0.0
  %447 = vmatprep.subr.mxu0 0.0
  %448 = vmatpush1.msra.mxu0 0.0
  %449 = vmatprep.subr.mxu0 0.0
  %450 = vmatpush1.msra.mxu0 0.0
  %451 = vmatprep.subr.mxu0 0.0
  %452 = vmatpush1.msra.mxu0 0.0
  %453 = vmatprep.subr.mxu0 0.0
  %454 = vmatpush1.msra.mxu0 0.0
  %455 = vmatprep.subr.mxu0 0.0
  %456 = vmatpush1.msra.mxu0 0.0
  %457 = vmatprep.subr.mxu0 0.0
  %458 = vmatpush1.msra.mxu0 0.0
  %459 = vmatprep.subr.mxu0 0.0
  %460 = vmatpush1.msra.mxu0 0.0
  %461 = vmatprep.subr.mxu0 0.0
  %462 = vmatpush1.msra.mxu0 0.0
  %463 = vmatprep.subr.mxu0 0.0
  %464 = vmatpush1.msra.mxu0 0.0
  %465 = vmatprep.subr.mxu0 0.0
  %466 = vmatpush1.msra.mxu0 0.0
  %467 = vmatprep.subr.mxu0 0.0
  %468 = vmatpush1.msra.mxu0 0.0
  %469 = vmatprep.subr.mxu0 0.0
  %470 = vmatpush1.msra.mxu0 0.0
  %471 = vmatprep.subr.mxu0 0.0
  %472 = vmatpush1.msra.mxu0 0.0
  %v473 = vand.u32 %v23, 4294901760
  %474 = vmatprep.subr.mxu0 %v473
  %v475 = vand.u32 %v22, 4294901760
  %476 = vmatpush1.msra.mxu0 %v475
  %v477 = vand.u32 %v19, 4294901760
  %478 = vmatprep.subr.mxu0 %v477
  %v479 = vand.u32 %v18, 4294901760
  %480 = vmatpush1.msra.mxu0 %v479
  %481 = vmatprep.subr.mxu0 0.0
  %482 = vmatpush2.msra.mxu0 0.0
  %483 = vmatprep.subr.mxu0 0.0
  %484 = vmatpush2.msra.mxu0 0.0
  %485 = vmatprep.subr.mxu0 0.0
  %486 = vmatpush2.msra.mxu0 0.0
  %487 = vmatprep.subr.mxu0 0.0
  %488 = vmatpush2.msra.mxu0 0.0
  %489 = vmatprep.subr.mxu0 0.0
  %490 = vmatpush2.msra.mxu0 0.0
  %491 = vmatprep.subr.mxu0 0.0
  %492 = vmatpush2.msra.mxu0 0.0
  %493 = vmatprep.subr.mxu0 0.0
  %494 = vmatpush2.msra.mxu0 0.0
  %495 = vmatprep.subr.mxu0 0.0
  %496 = vmatpush2.msra.mxu0 0.0
  %497 = vmatprep.subr.mxu0 0.0
  %498 = vmatpush2.msra.mxu0 0.0
  %499 = vmatprep.subr.mxu0 0.0
  %500 = vmatpush2.msra.mxu0 0.0
  %501 = vmatprep.subr.mxu0 0.0
  %502 = vmatpush2.msra.mxu0 0.0
  %503 = vmatprep.subr.mxu0 0.0
  %504 = vmatpush2.msra.mxu0 0.0
  %505 = vmatprep.subr.mxu0 0.0
  %506 = vmatpush2.msra.mxu0 0.0
  %507 = vmatprep.subr.mxu0 0.0
  %508 = vmatpush2.msra.mxu0 0.0
  %509 = vmatprep.subr.mxu0 0.0
  %510 = vmatpush2.msra.mxu0 0.0
  %511 = vmatprep.subr.mxu0 0.0
  %512 = vmatpush2.msra.mxu0 0.0
  %513 = vmatprep.mubr.f32.mxu0 0.0
  %v514 = vand.u32 %v28, 4294901760
  %515 = vmatmul.mubr.f32.gmra.mxu0 %v514
  %v516 = vpop.f32.mrf.mxu0
  %v517 = vadd.f32 %v441, %v516
  %v518 = vpop.f32.mrf.mxu0
  %v519 = vadd.f32 %v443, %v518
  %520 = vdwg.mxu0
  %521 = vmatprep.subr.mxu0 0.0
  %522 = vmatpush1.msra.mxu0 0.0
  %523 = vmatprep.subr.mxu0 0.0
  %524 = vmatpush1.msra.mxu0 0.0
  %525 = vmatprep.subr.mxu0 0.0
  %526 = vmatpush1.msra.mxu0 0.0
  %527 = vmatprep.subr.mxu0 0.0
  %528 = vmatpush1.msra.mxu0 0.0
  %529 = vmatprep.subr.mxu0 0.0
  %530 = vmatpush1.msra.mxu0 0.0
  %531 = vmatprep.subr.mxu0 0.0
  %532 = vmatpush1.msra.mxu0 0.0
  %533 = vmatprep.subr.mxu0 0.0
  %534 = vmatpush1.msra.mxu0 0.0
  %535 = vmatprep.subr.mxu0 0.0
  %536 = vmatpush1.msra.mxu0 0.0
  %537 = vmatprep.subr.mxu0 0.0
  %538 = vmatpush1.msra.mxu0 0.0
  %539 = vmatprep.subr.mxu0 0.0
  %540 = vmatpush1.msra.mxu0 0.0
  %541 = vmatprep.subr.mxu0 0.0
  %542 = vmatpush1.msra.mxu0 0.0
  %543 = vmatprep.subr.mxu0 0.0
  %544 = vmatpush1.msra.mxu0 0.0
  %545 = vmatprep.subr.mxu0 0.0
  %546 = vmatpush1.msra.mxu0 0.0
  %547 = vmatprep.subr.mxu0 0.0
  %548 = vmatpush1.msra.mxu0 0.0
  %v549 = vand.u32 %v25, 4294901760
  %550 = vmatprep.subr.mxu0 %v549
  %v551 = vand.u32 %v24, 4294901760
  %552 = vmatpush1.msra.mxu0 %v551
  %v553 = vand.u32 %v21, 4294901760
  %554 = vmatprep.subr.mxu0 %v553
  %v555 = vand.u32 %v20, 4294901760
  %556 = vmatpush1.msra.mxu0 %v555
  %557 = vmatprep.subr.mxu0 0.0
  %558 = vmatpush2.msra.mxu0 0.0
  %559 = vmatprep.subr.mxu0 0.0
  %560 = vmatpush2.msra.mxu0 0.0
  %561 = vmatprep.subr.mxu0 0.0
  %562 = vmatpush2.msra.mxu0 0.0
  %563 = vmatprep.subr.mxu0 0.0
  %564 = vmatpush2.msra.mxu0 0.0
  %565 = vmatprep.subr.mxu0 0.0
  %566 = vmatpush2.msra.mxu0 0.0
  %567 = vmatprep.subr.mxu0 0.0
  %568 = vmatpush2.msra.mxu0 0.0
  %569 = vmatprep.subr.mxu0 0.0
  %570 = vmatpush2.msra.mxu0 0.0
  %571 = vmatprep.subr.mxu0 0.0
  %572 = vmatpush2.msra.mxu0 0.0
  %573 = vmatprep.subr.mxu0 0.0
  %574 = vmatpush2.msra.mxu0 0.0
  %575 = vmatprep.subr.mxu0 0.0
  %576 = vmatpush2.msra.mxu0 0.0
  %577 = vmatprep.subr.mxu0 0.0
  %578 = vmatpush2.msra.mxu0 0.0
  %579 = vmatprep.subr.mxu0 0.0
  %580 = vmatpush2.msra.mxu0 0.0
  %581 = vmatprep.subr.mxu0 0.0
  %582 = vmatpush2.msra.mxu0 0.0
  %583 = vmatprep.subr.mxu0 0.0
  %584 = vmatpush2.msra.mxu0 0.0
  %585 = vmatprep.subr.mxu0 0.0
  %586 = vmatpush2.msra.mxu0 0.0
  %587 = vmatprep.subr.mxu0 0.0
  %588 = vmatpush2.msra.mxu0 0.0
  %589 = vmatprep.mubr.f32.mxu0 0.0
  %v590 = vand.u32 %v28, 4294901760
  %v591 = vsub.f32 %v28, %v590
  %v592 = vand.u32 %v591, 4294901760
  %v593 = vsub.f32 %v591, %v592
  %v594 = vand.u32 %v593, 4294901760
  %595 = vmatmul.mubr.f32.gmra.mxu0 %v594
  %v596 = vpop.f32.mrf.mxu0
  %v597 = vadd.f32 0.0, %v596
  %v598 = vpop.f32.mrf.mxu0
  %v599 = vadd.f32 0.0, %v598
  %600 = vdwg.mxu0
  %601 = vmatprep.subr.mxu0 0.0
  %602 = vmatpush1.msra.mxu0 0.0
  %603 = vmatprep.subr.mxu0 0.0
  %604 = vmatpush1.msra.mxu0 0.0
  %605 = vmatprep.subr.mxu0 0.0
  %606 = vmatpush1.msra.mxu0 0.0
  %607 = vmatprep.subr.mxu0 0.0
  %608 = vmatpush1.msra.mxu0 0.0
  %609 = vmatprep.subr.mxu0 0.0
  %610 = vmatpush1.msra.mxu0 0.0
  %611 = vmatprep.subr.mxu0 0.0
  %612 = vmatpush1.msra.mxu0 0.0
  %613 = vmatprep.subr.mxu0 0.0
  %614 = vmatpush1.msra.mxu0 0.0
  %615 = vmatprep.subr.mxu0 0.0
  %616 = vmatpush1.msra.mxu0 0.0
  %617 = vmatprep.subr.mxu0 0.0
  %618 = vmatpush1.msra.mxu0 0.0
  %619 = vmatprep.subr.mxu0 0.0
  %620 = vmatpush1.msra.mxu0 0.0
  %621 = vmatprep.subr.mxu0 0.0
  %622 = vmatpush1.msra.mxu0 0.0
  %623 = vmatprep.subr.mxu0 0.0
  %624 = vmatpush1.msra.mxu0 0.0
  %625 = vmatprep.subr.mxu0 0.0
  %626 = vmatpush1.msra.mxu0 0.0
  %627 = vmatprep.subr.mxu0 0.0
  %628 = vmatpush1.msra.mxu0 0.0
  %v629 = vand.u32 %v25, 4294901760
  %v630 = vsub.f32 %v25, %v629
  %v631 = vand.u32 %v630, 4294901760
  %v632 = vsub.f32 %v630, %v631
  %v633 = vand.u32 %v632, 4294901760
  %634 = vmatprep.subr.mxu0 %v633
  %v635 = vand.u32 %v24, 4294901760
  %v636 = vsub.f32 %v24, %v635
  %v637 = vand.u32 %v636, 4294901760
  %v638 = vsub.f32 %v636, %v637
  %v639 = vand.u32 %v638, 4294901760
  %640 = vmatpush1.msra.mxu0 %v639
  %v641 = vand.u32 %v21, 4294901760
  %v642 = vsub.f32 %v21, %v641
  %v643 = vand.u32 %v642, 4294901760
  %v644 = vsub.f32 %v642, %v643
  %v645 = vand.u32 %v644, 4294901760
  %646 = vmatprep.subr.mxu0 %v645
  %v647 = vand.u32 %v20, 4294901760
  %v648 = vsub.f32 %v20, %v647
  %v649 = vand.u32 %v648, 4294901760
  %v650 = vsub.f32 %v648, %v649
  %v651 = vand.u32 %v650, 4294901760
  %652 = vmatpush1.msra.mxu0 %v651
  %653 = vmatprep.subr.mxu0 0.0
  %654 = vmatpush2.msra.mxu0 0.0
  %655 = vmatprep.subr.mxu0 0.0
  %656 = vmatpush2.msra.mxu0 0.0
  %657 = vmatprep.subr.mxu0 0.0
  %658 = vmatpush2.msra.mxu0 0.0
  %659 = vmatprep.subr.mxu0 0.0
  %660 = vmatpush2.msra.mxu0 0.0
  %661 = vmatprep.subr.mxu0 0.0
  %662 = vmatpush2.msra.mxu0 0.0
  %663 = vmatprep.subr.mxu0 0.0
  %664 = vmatpush2.msra.mxu0 0.0
  %665 = vmatprep.subr.mxu0 0.0
  %666 = vmatpush2.msra.mxu0 0.0
  %667 = vmatprep.subr.mxu0 0.0
  %668 = vmatpush2.msra.mxu0 0.0
  %669 = vmatprep.subr.mxu0 0.0
  %670 = vmatpush2.msra.mxu0 0.0
  %671 = vmatprep.subr.mxu0 0.0
  %672 = vmatpush2.msra.mxu0 0.0
  %673 = vmatprep.subr.mxu0 0.0
  %674 = vmatpush2.msra.mxu0 0.0
  %675 = vmatprep.subr.mxu0 0.0
  %676 = vmatpush2.msra.mxu0 0.0
  %677 = vmatprep.subr.mxu0 0.0
  %678 = vmatpush2.msra.mxu0 0.0
  %679 = vmatprep.subr.mxu0 0.0
  %680 = vmatpush2.msra.mxu0 0.0
  %681 = vmatprep.subr.mxu0 0.0
  %682 = vmatpush2.msra.mxu0 0.0
  %683 = vmatprep.subr.mxu0 0.0
  %684 = vmatpush2.msra.mxu0 0.0
  %685 = vmatprep.mubr.f32.mxu0 0.0
  %v686 = vand.u32 %v28, 4294901760
  %687 = vmatmul.mubr.f32.gmra.mxu0 %v686
  %v688 = vpop.f32.mrf.mxu0
  %v689 = vadd.f32 %v597, %v688
  %v690 = vpop.f32.mrf.mxu0
  %v691 = vadd.f32 %v599, %v690
  %692 = vdwg.mxu0
  %693 = vmatprep.subr.mxu0 0.0
  %694 = vmatpush1.msra.mxu0 0.0
  %695 = vmatprep.subr.mxu0 0.0
  %696 = vmatpush1.msra.mxu0 0.0
  %697 = vmatprep.subr.mxu0 0.0
  %698 = vmatpush1.msra.mxu0 0.0
  %699 = vmatprep.subr.mxu0 0.0
  %700 = vmatpush1.msra.mxu0 0.0
  %701 = vmatprep.subr.mxu0 0.0
  %702 = vmatpush1.msra.mxu0 0.0
  %703 = vmatprep.subr.mxu0 0.0
  %704 = vmatpush1.msra.mxu0 0.0
  %705 = vmatprep.subr.mxu0 0.0
  %706 = vmatpush1.msra.mxu0 0.0
  %707 = vmatprep.subr.mxu0 0.0
  %708 = vmatpush1.msra.mxu0 0.0
  %709 = vmatprep.subr.mxu0 0.0
  %710 = vmatpush1.msra.mxu0 0.0
  %711 = vmatprep.subr.mxu0 0.0
  %712 = vmatpush1.msra.mxu0 0.0
  %713 = vmatprep.subr.mxu0 0.0
  %714 = vmatpush1.msra.mxu0 0.0
  %715 = vmatprep.subr.mxu0 0.0
  %716 = vmatpush1.msra.mxu0 0.0
  %717 = vmatprep.subr.mxu0 0.0
  %718 = vmatpush1.msra.mxu0 0.0
  %719 = vmatprep.subr.mxu0 0.0
  %720 = vmatpush1.msra.mxu0 0.0
  %v721 = vand.u32 %v25, 4294901760
  %v722 = vsub.f32 %v25, %v721
  %723 = vmatprep.subr.mxu0 %v722
  %v724 = vand.u32 %v24, 4294901760
  %v725 = vsub.f32 %v24, %v724
  %726 = vmatpush1.msra.mxu0 %v725
  %v727 = vand.u32 %v21, 4294901760
  %v728 = vsub.f32 %v21, %v727
  %729 = vmatprep.subr.mxu0 %v728
  %v730 = vand.u32 %v20, 4294901760
  %v731 = vsub.f32 %v20, %v730
  %732 = vmatpush1.msra.mxu0 %v731
  %733 = vmatprep.subr.mxu0 0.0
  %734 = vmatpush2.msra.mxu0 0.0
  %735 = vmatprep.subr.mxu0 0.0
  %736 = vmatpush2.msra.mxu0 0.0
  %737 = vmatprep.subr.mxu0 0.0
  %738 = vmatpush2.msra.mxu0 0.0
  %739 = vmatprep.subr.mxu0 0.0
  %740 = vmatpush2.msra.mxu0 0.0
  %741 = vmatprep.subr.mxu0 0.0
  %742 = vmatpush2.msra.mxu0 0.0
  %743 = vmatprep.subr.mxu0 0.0
  %744 = vmatpush2.msra.mxu0 0.0
  %745 = vmatprep.subr.mxu0 0.0
  %746 = vmatpush2.msra.mxu0 0.0
  %747 = vmatprep.subr.mxu0 0.0
  %748 = vmatpush2.msra.mxu0 0.0
  %749 = vmatprep.subr.mxu0 0.0
  %750 = vmatpush2.msra.mxu0 0.0
  %751 = vmatprep.subr.mxu0 0.0
  %752 = vmatpush2.msra.mxu0 0.0
  %753 = vmatprep.subr.mxu0 0.0
  %754 = vmatpush2.msra.mxu0 0.0
  %755 = vmatprep.subr.mxu0 0.0
  %756 = vmatpush2.msra.mxu0 0.0
  %757 = vmatprep.subr.mxu0 0.0
  %758 = vmatpush2.msra.mxu0 0.0
  %759 = vmatprep.subr.mxu0 0.0
  %760 = vmatpush2.msra.mxu0 0.0
  %761 = vmatprep.subr.mxu0 0.0
  %762 = vmatpush2.msra.mxu0 0.0
  %763 = vmatprep.subr.mxu0 0.0
  %764 = vmatpush2.msra.mxu0 0.0
  %765 = vmatprep.mubr.f32.mxu0 0.0
  %v766 = vand.u32 %v28, 4294901760
  %v767 = vsub.f32 %v28, %v766
  %768 = vmatmul.mubr.f32.gmra.mxu0 %v767
  %v769 = vpop.f32.mrf.mxu0
  %v770 = vadd.f32 %v689, %v769
  %v771 = vpop.f32.mrf.mxu0
  %v772 = vadd.f32 %v691, %v771
  %773 = vdwg.mxu0
  %774 = vmatprep.subr.mxu0 0.0
  %775 = vmatpush1.msra.mxu0 0.0
  %776 = vmatprep.subr.mxu0 0.0
  %777 = vmatpush1.msra.mxu0 0.0
  %778 = vmatprep.subr.mxu0 0.0
  %779 = vmatpush1.msra.mxu0 0.0
  %780 = vmatprep.subr.mxu0 0.0
  %781 = vmatpush1.msra.mxu0 0.0
  %782 = vmatprep.subr.mxu0 0.0
  %783 = vmatpush1.msra.mxu0 0.0
  %784 = vmatprep.subr.mxu0 0.0
  %785 = vmatpush1.msra.mxu0 0.0
  %786 = vmatprep.subr.mxu0 0.0
  %787 = vmatpush1.msra.mxu0 0.0
  %788 = vmatprep.subr.mxu0 0.0
  %789 = vmatpush1.msra.mxu0 0.0
  %790 = vmatprep.subr.mxu0 0.0
  %791 = vmatpush1.msra.mxu0 0.0
  %792 = vmatprep.subr.mxu0 0.0
  %793 = vmatpush1.msra.mxu0 0.0
  %794 = vmatprep.subr.mxu0 0.0
  %795 = vmatpush1.msra.mxu0 0.0
  %796 = vmatprep.subr.mxu0 0.0
  %797 = vmatpush1.msra.mxu0 0.0
  %798 = vmatprep.subr.mxu0 0.0
  %799 = vmatpush1.msra.mxu0 0.0
  %800 = vmatprep.subr.mxu0 0.0
  %801 = vmatpush1.msra.mxu0 0.0
  %v802 = vand.u32 %v25, 4294901760
  %803 = vmatprep.subr.mxu0 %v802
  %v804 = vand.u32 %v24, 4294901760
  %805 = vmatpush1.msra.mxu0 %v804
  %v806 = vand.u32 %v21, 4294901760
  %807 = vmatprep.subr.mxu0 %v806
  %v808 = vand.u32 %v20, 4294901760
  %809 = vmatpush1.msra.mxu0 %v808
  %810 = vmatprep.subr.mxu0 0.0
  %811 = vmatpush2.msra.mxu0 0.0
  %812 = vmatprep.subr.mxu0 0.0
  %813 = vmatpush2.msra.mxu0 0.0
  %814 = vmatprep.subr.mxu0 0.0
  %815 = vmatpush2.msra.mxu0 0.0
  %816 = vmatprep.subr.mxu0 0.0
  %817 = vmatpush2.msra.mxu0 0.0
  %818 = vmatprep.subr.mxu0 0.0
  %819 = vmatpush2.msra.mxu0 0.0
  %820 = vmatprep.subr.mxu0 0.0
  %821 = vmatpush2.msra.mxu0 0.0
  %822 = vmatprep.subr.mxu0 0.0
  %823 = vmatpush2.msra.mxu0 0.0
  %824 = vmatprep.subr.mxu0 0.0
  %825 = vmatpush2.msra.mxu0 0.0
  %826 = vmatprep.subr.mxu0 0.0
  %827 = vmatpush2.msra.mxu0 0.0
  %828 = vmatprep.subr.mxu0 0.0
  %829 = vmatpush2.msra.mxu0 0.0
  %830 = vmatprep.subr.mxu0 0.0
  %831 = vmatpush2.msra.mxu0 0.0
  %832 = vmatprep.subr.mxu0 0.0
  %833 = vmatpush2.msra.mxu0 0.0
  %834 = vmatprep.subr.mxu0 0.0
  %835 = vmatpush2.msra.mxu0 0.0
  %836 = vmatprep.subr.mxu0 0.0
  %837 = vmatpush2.msra.mxu0 0.0
  %838 = vmatprep.subr.mxu0 0.0
  %839 = vmatpush2.msra.mxu0 0.0
  %840 = vmatprep.subr.mxu0 0.0
  %841 = vmatpush2.msra.mxu0 0.0
  %842 = vmatprep.mubr.f32.mxu0 0.0
  %v843 = vand.u32 %v28, 4294901760
  %v844 = vsub.f32 %v28, %v843
  %v845 = vand.u32 %v844, 4294901760
  %846 = vmatmul.mubr.f32.gmra.mxu0 %v845
  %v847 = vpop.f32.mrf.mxu0
  %v848 = vadd.f32 %v770, %v847
  %v849 = vpop.f32.mrf.mxu0
  %v850 = vadd.f32 %v772, %v849
  %851 = vdwg.mxu0
  %852 = vmatprep.subr.mxu0 0.0
  %853 = vmatpush1.msra.mxu0 0.0
  %854 = vmatprep.subr.mxu0 0.0
  %855 = vmatpush1.msra.mxu0 0.0
  %856 = vmatprep.subr.mxu0 0.0
  %857 = vmatpush1.msra.mxu0 0.0
  %858 = vmatprep.subr.mxu0 0.0
  %859 = vmatpush1.msra.mxu0 0.0
  %860 = vmatprep.subr.mxu0 0.0
  %861 = vmatpush1.msra.mxu0 0.0
  %862 = vmatprep.subr.mxu0 0.0
  %863 = vmatpush1.msra.mxu0 0.0
  %864 = vmatprep.subr.mxu0 0.0
  %865 = vmatpush1.msra.mxu0 0.0
  %866 = vmatprep.subr.mxu0 0.0
  %867 = vmatpush1.msra.mxu0 0.0
  %868 = vmatprep.subr.mxu0 0.0
  %869 = vmatpush1.msra.mxu0 0.0
  %870 = vmatprep.subr.mxu0 0.0
  %871 = vmatpush1.msra.mxu0 0.0
  %872 = vmatprep.subr.mxu0 0.0
  %873 = vmatpush1.msra.mxu0 0.0
  %874 = vmatprep.subr.mxu0 0.0
  %875 = vmatpush1.msra.mxu0 0.0
  %876 = vmatprep.subr.mxu0 0.0
  %877 = vmatpush1.msra.mxu0 0.0
  %878 = vmatprep.subr.mxu0 0.0
  %879 = vmatpush1.msra.mxu0 0.0
  %v880 = vand.u32 %v25, 4294901760
  %v881 = vsub.f32 %v25, %v880
  %v882 = vand.u32 %v881, 4294901760
  %883 = vmatprep.subr.mxu0 %v882
  %v884 = vand.u32 %v24, 4294901760
  %v885 = vsub.f32 %v24, %v884
  %v886 = vand.u32 %v885, 4294901760
  %887 = vmatpush1.msra.mxu0 %v886
  %v888 = vand.u32 %v21, 4294901760
  %v889 = vsub.f32 %v21, %v888
  %v890 = vand.u32 %v889, 4294901760
  %891 = vmatprep.subr.mxu0 %v890
  %v892 = vand.u32 %v20, 4294901760
  %v893 = vsub.f32 %v20, %v892
  %v894 = vand.u32 %v893, 4294901760
  %895 = vmatpush1.msra.mxu0 %v894
  %896 = vmatprep.subr.mxu0 0.0
  %897 = vmatpush2.msra.mxu0 0.0
  %898 = vmatprep.subr.mxu0 0.0
  %899 = vmatpush2.msra.mxu0 0.0
  %900 = vmatprep.subr.mxu0 0.0
  %901 = vmatpush2.msra.mxu0 0.0
  %902 = vmatprep.subr.mxu0 0.0
  %903 = vmatpush2.msra.mxu0 0.0
  %904 = vmatprep.subr.mxu0 0.0
  %905 = vmatpush2.msra.mxu0 0.0
  %906 = vmatprep.subr.mxu0 0.0
  %907 = vmatpush2.msra.mxu0 0.0
  %908 = vmatprep.subr.mxu0 0.0
  %909 = vmatpush2.msra.mxu0 0.0
  %910 = vmatprep.subr.mxu0 0.0
  %911 = vmatpush2.msra.mxu0 0.0
  %912 = vmatprep.subr.mxu0 0.0
  %913 = vmatpush2.msra.mxu0 0.0
  %914 = vmatprep.subr.mxu0 0.0
  %915 = vmatpush2.msra.mxu0 0.0
  %916 = vmatprep.subr.mxu0 0.0
  %917 = vmatpush2.msra.mxu0 0.0
  %918 = vmatprep.subr.mxu0 0.0
  %919 = vmatpush2.msra.mxu0 0.0
  %920 = vmatprep.subr.mxu0 0.0
  %921 = vmatpush2.msra.mxu0 0.0
  %922 = vmatprep.subr.mxu0 0.0
  %923 = vmatpush2.msra.mxu0 0.0
  %924 = vmatprep.subr.mxu0 0.0
  %925 = vmatpush2.msra.mxu0 0.0
  %926 = vmatprep.subr.mxu0 0.0
  %927 = vmatpush2.msra.mxu0 0.0
  %928 = vmatprep.mubr.f32.mxu0 0.0
  %v929 = vand.u32 %v28, 4294901760
  %930 = vmatmul.mubr.f32.gmra.mxu0 %v929
  %v931 = vpop.f32.mrf.mxu0
  %v932 = vadd.f32 %v848, %v931
  %v933 = vpop.f32.mrf.mxu0
  %v934 = vadd.f32 %v850, %v933
  %935 = vdwg.mxu0
  %936 = vmatprep.subr.mxu0 0.0
  %937 = vmatpush1.msra.mxu0 0.0
  %938 = vmatprep.subr.mxu0 0.0
  %939 = vmatpush1.msra.mxu0 0.0
  %940 = vmatprep.subr.mxu0 0.0
  %941 = vmatpush1.msra.mxu0 0.0
  %942 = vmatprep.subr.mxu0 0.0
  %943 = vmatpush1.msra.mxu0 0.0
  %944 = vmatprep.subr.mxu0 0.0
  %945 = vmatpush1.msra.mxu0 0.0
  %946 = vmatprep.subr.mxu0 0.0
  %947 = vmatpush1.msra.mxu0 0.0
  %948 = vmatprep.subr.mxu0 0.0
  %949 = vmatpush1.msra.mxu0 0.0
  %950 = vmatprep.subr.mxu0 0.0
  %951 = vmatpush1.msra.mxu0 0.0
  %952 = vmatprep.subr.mxu0 0.0
  %953 = vmatpush1.msra.mxu0 0.0
  %954 = vmatprep.subr.mxu0 0.0
  %955 = vmatpush1.msra.mxu0 0.0
  %956 = vmatprep.subr.mxu0 0.0
  %957 = vmatpush1.msra.mxu0 0.0
  %958 = vmatprep.subr.mxu0 0.0
  %959 = vmatpush1.msra.mxu0 0.0
  %960 = vmatprep.subr.mxu0 0.0
  %961 = vmatpush1.msra.mxu0 0.0
  %962 = vmatprep.subr.mxu0 0.0
  %963 = vmatpush1.msra.mxu0 0.0
  %v964 = vand.u32 %v25, 4294901760
  %965 = vmatprep.subr.mxu0 %v964
  %v966 = vand.u32 %v24, 4294901760
  %967 = vmatpush1.msra.mxu0 %v966
  %v968 = vand.u32 %v21, 4294901760
  %969 = vmatprep.subr.mxu0 %v968
  %v970 = vand.u32 %v20, 4294901760
  %971 = vmatpush1.msra.mxu0 %v970
  %972 = vmatprep.subr.mxu0 0.0
  %973 = vmatpush2.msra.mxu0 0.0
  %974 = vmatprep.subr.mxu0 0.0
  %975 = vmatpush2.msra.mxu0 0.0
  %976 = vmatprep.subr.mxu0 0.0
  %977 = vmatpush2.msra.mxu0 0.0
  %978 = vmatprep.subr.mxu0 0.0
  %979 = vmatpush2.msra.mxu0 0.0
  %980 = vmatprep.subr.mxu0 0.0
  %981 = vmatpush2.msra.mxu0 0.0
  %982 = vmatprep.subr.mxu0 0.0
  %983 = vmatpush2.msra.mxu0 0.0
  %984 = vmatprep.subr.mxu0 0.0
  %985 = vmatpush2.msra.mxu0 0.0
  %986 = vmatprep.subr.mxu0 0.0
  %987 = vmatpush2.msra.mxu0 0.0
  %988 = vmatprep.subr.mxu0 0.0
  %989 = vmatpush2.msra.mxu0 0.0
  %990 = vmatprep.subr.mxu0 0.0
  %991 = vmatpush2.msra.mxu0 0.0
  %992 = vmatprep.subr.mxu0 0.0
  %993 = vmatpush2.msra.mxu0 0.0
  %994 = vmatprep.subr.mxu0 0.0
  %995 = vmatpush2.msra.mxu0 0.0
  %996 = vmatprep.subr.mxu0 0.0
  %997 = vmatpush2.msra.mxu0 0.0
  %998 = vmatprep.subr.mxu0 0.0
  %999 = vmatpush2.msra.mxu0 0.0
  %1000 = vmatprep.subr.mxu0 0.0
  %1001 = vmatpush2.msra.mxu0 0.0
  %1002 = vmatprep.subr.mxu0 0.0
  %1003 = vmatpush2.msra.mxu0 0.0
  %1004 = vmatprep.mubr.f32.mxu0 0.0
  %v1005 = vand.u32 %v28, 4294901760
  %1006 = vmatmul.mubr.f32.gmra.mxu0 %v1005
  %v1007 = vpop.f32.mrf.mxu0
  %v1008 = vadd.f32 %v932, %v1007
  %v1009 = vpop.f32.mrf.mxu0
  %v1010 = vadd.f32 %v934, %v1009
  %1011 = vdwg.mxu0
  %v1012 = vld [vmem:[%s2] sm:$0xf]
  %v1014 = vlaneseq
  %v1015 = vshrl.u32 %v1014, 7
  %v1016 = vsub.s32 0, %v1015
  %v1017 = vrot.slane %v1012, %v1016
  %v1018 = vlaneseq
  %v1019 = vshrl.u32 %v1018, 7
  %v1020 = vsub.s32 1, %v1019
  %v1021 = vrot.slane %v1012, %v1020
  %v1022 = vlaneseq
  %v1023 = vshrl.u32 %v1022, 7
  %v1024 = vsub.s32 2, %v1023
  %v1025 = vrot.slane %v1012, %v1024
  %v1026 = vlaneseq
  %v1027 = vshrl.u32 %v1026, 7
  %v1028 = vsub.s32 3, %v1027
  %v1029 = vrot.slane %v1012, %v1028
  %v1034 = vmul.f32 %v517, %v1017
  %v1035 = vmul.f32 %v519, %v1021
  %v1036 = vmul.f32 %v1008, %v1025
  %v1037 = vmul.f32 %v1010, %v1029
  %v1038 = vld [vmem:[%s3] sm:$0xf]
  %v1040 = vlaneseq
  %v1041 = vshrl.u32 %v1040, 7
  %v1042 = vsub.s32 0, %v1041
  %v1043 = vrot.slane %v1038, %v1042
  %v1044 = vlaneseq
  %v1045 = vshrl.u32 %v1044, 7
  %v1046 = vsub.s32 1, %v1045
  %v1047 = vrot.slane %v1038, %v1046
  %v1048 = vlaneseq
  %v1049 = vshrl.u32 %v1048, 7
  %v1050 = vsub.s32 2, %v1049
  %v1051 = vrot.slane %v1038, %v1050
  %v1052 = vlaneseq
  %v1053 = vshrl.u32 %v1052, 7
  %v1054 = vsub.s32 3, %v1053
  %v1055 = vrot.slane %v1038, %v1054
  %v1060 = vadd.f32 %v1034, %v1043
  %v1061 = vadd.f32 %v1035, %v1047
  %v1062 = vadd.f32 %v1036, %v1051
  %v1063 = vadd.f32 %v1037, %v1055
  %v1064 = vand.u32 2147483647, %v1060
  %vm1065 = vcmp.le.f32.partialorder %v1064, 0.7853982
  %vm1066 = vcmp.lt.s32.totalorder %v1060, 0
  %v1067 = vand.u32 %v1060, 2139095040
  %v1068 = vshrl.u32 %v1067, 23
  %v1069 = vsub.s32 %v1068, 127
  %v1070 = vand.u32 2147483647, %v1060
  %v1071 = vand.u32 %v1070, 8388607
  %v1072 = vor.u32 %v1071, 8388608
  %v1073 = vsub.s32 0, %v1072
  %v1074 = vadd.s32 %v1069, 1
  %vm1075 = vcmp.gt.s32.totalorder %v1074, 0
  %v1076 = vsel %vm1075, %v1074, 0
  %v1077 = vshrl.u32 %v1076, 5
  %v1078 = vand.u32 %v1076, 31
  %v1079 = vsub.s32 32, %v1078
  %v1080 = vshrl.u32 683565275, %v1079
  %v1081 = vshll.u32 683565275, %v1078
  %v1082 = vshrl.u32 2475754826, %v1079
  %v1083 = vor.u32 %v1081, %v1082
  %v1084 = vshll.u32 2475754826, %v1078
  %v1085 = vshrl.u32 2131351028, %v1079
  %v1086 = vor.u32 %v1084, %v1085
  %v1087 = vshll.u32 2131351028, %v1078
  %v1088 = vshrl.u32 2102212464, %v1079
  %v1089 = vor.u32 %v1087, %v1088
  %v1090 = vshll.u32 2102212464, %v1078
  %v1091 = vshrl.u32 920167782, %v1079
  %v1092 = vor.u32 %v1090, %v1091
  %v1093 = vshll.u32 920167782, %v1078
  %v1094 = vshrl.u32 1326507024, %v1079
  %v1095 = vor.u32 %v1093, %v1094
  %vm1096 = vcmp.lt.s32.totalorder %v1077, 1
  %vm1097 = vcmp.lt.s32.totalorder %v1077, 2
  %vm1098 = vcmp.lt.s32.totalorder %v1077, 3
  %vm1099 = vcmp.lt.s32.totalorder %v1077, 4
  %v1100 = vsel %vm1096, %v1080, %v1083
  %v1101 = vsel %vm1099, %v1089, 2102212464
  %v1102 = vsel %vm1098, %v1086, %v1101
  %v1103 = vsel %vm1097, %v1100, %v1102
  %v1104 = vsel %vm1096, %v1083, %v1086
  %v1105 = vsel %vm1099, %v1092, 920167782
  %v1106 = vsel %vm1098, %v1089, %v1105
  %v1107 = vsel %vm1097, %v1104, %v1106
  %v1108 = vsel %vm1096, %v1086, %v1089
  %v1109 = vsel %vm1099, %v1095, 1326507024
  %v1110 = vsel %vm1098, %v1092, %v1109
  %v1111 = vsel %vm1097, %v1108, %v1110
  %v1112 = vshll.u32 %v1072, 8
  %v1113 = vmul.u32.u64.compose %v1112, %v1111
  %v1114 = vextract.low.u32 %v1113
  %v1115 = vextract.high.u32 %v1113
  %v1116 = vmul.u32.u64.compose %v1112, %v1107
  %v1117 = vextract.low.u32 %v1116
  %v1118 = vextract.high.u32 %v1116
  %v1119 = vmul.u32 %v1112, %v1103
  %v1120 = vadd.s32 %v1115, %v1117
  %vm1121 = vc.u32 %v1115, %v1117
  %v1122 = vadd.s32 %v1118, 1
  %v1123 = vsel %vm1121, %v1122, %v1118
  %v1124 = vadd.s32 %v1119, %v1123
  %v1125 = vadd.s32 %v1124, 536870912
  %v1126 = vshrl.u32 %v1125, 30
  %v1127 = vshll.u32 %v1126, 30
  %v1128 = vsub.s32 %v1124, %v1127
  %vm1129 = vcmp.lt.s32.totalorder %v1128, 0
  %v1130 = vsub.s32 0, %v1128
  %v1131 = vsel %vm1129, %v1130, %v1128
  %v1132 = vclz %v1131
  %v1133 = vsub.s32 %v1132, 2
  %vm1134 = vcmp.gt.s32.totalorder 0, %v1133
  %v1135 = vsel %vm1134, 0, %v1133
  %v1136 = vsub.s32 32, %v1135
  %v1137 = vshll.u32 %v1128, %v1135
  %v1138 = vshrl.u32 %v1120, %v1136
  %v1139 = vor.u32 %v1137, %v1138
  %v1140 = vsub.s32 4294967266, %v1135
  %v1141 = vadd.s32 %v1140, 127
  %v1142 = vshll.u32 %v1141, 23
  %v1143 = vor.u32 4788187, %v1142
  %v1144 = vand.u32 2147483647, %v1143
  %v1146 = vcvt.s32.f32 %v1139
  %v1147 = vmul.f32 %v1146, %v1144
  %v1148 = vxor.u32 %v1147, 2147483648
  %v1149 = vsel %vm1066, %v1148, %v1147
  %v1150 = vsub.s32 4, %v1126
  %v1151 = vsel %vm1066, %v1150, %v1126
  %v1152 = vsel %vm1065, %v1060, %v1149
  %v1153 = vsel %vm1065, 0, %v1151
  %v1154 = vcosq.f32.pop %v1152
  %v1155 = vsinq.f32.pop %v1152
  %vm1156 = vweird.f32 %v1060
  %v1157 = vadd.s32 %v1153, 3
  %v1158 = vand.u32 %v1157, 3
  %vm1159 = vcmp.lt.s32.totalorder %v1158, 2
  %vm1160 = vcmp.eq.s32.totalorder %v1158, 0
  %v1161 = vxor.u32 %v1155, 2147483648
  %v1162 = vsel %vm1160, %v1154, %v1161
  %vm1163 = vcmp.eq.s32.totalorder %v1158, 2
  %v1164 = vxor.u32 %v1154, 2147483648
  %v1165 = vsel %vm1163, %v1164, %v1155
  %v1166 = vsel %vm1159, %v1162, %v1165
  %v1167 = vsel %vm1156, nan, %v1166
  %v1168 = vand.u32 2147483647, %v1061
  %vm1169 = vcmp.le.f32.partialorder %v1168, 0.7853982
  %vm1170 = vcmp.lt.s32.totalorder %v1061, 0
  %v1171 = vand.u32 %v1061, 2139095040
  %v1172 = vshrl.u32 %v1171, 23
  %v1173 = vsub.s32 %v1172, 127
  %v1174 = vand.u32 2147483647, %v1061
  %v1175 = vand.u32 %v1174, 8388607
  %v1176 = vor.u32 %v1175, 8388608
  %v1177 = vsub.s32 0, %v1176
  %v1178 = vadd.s32 %v1173, 1
  %vm1179 = vcmp.gt.s32.totalorder %v1178, 0
  %v1180 = vsel %vm1179, %v1178, 0
  %v1181 = vshrl.u32 %v1180, 5
  %v1182 = vand.u32 %v1180, 31
  %v1183 = vsub.s32 32, %v1182
  %v1184 = vshrl.u32 683565275, %v1183
  %v1185 = vshll.u32 683565275, %v1182
  %v1186 = vshrl.u32 2475754826, %v1183
  %v1187 = vor.u32 %v1185, %v1186
  %v1188 = vshll.u32 2475754826, %v1182
  %v1189 = vshrl.u32 2131351028, %v1183
  %v1190 = vor.u32 %v1188, %v1189
  %v1191 = vshll.u32 2131351028, %v1182
  %v1192 = vshrl.u32 2102212464, %v1183
  %v1193 = vor.u32 %v1191, %v1192
  %v1194 = vshll.u32 2102212464, %v1182
  %v1195 = vshrl.u32 920167782, %v1183
  %v1196 = vor.u32 %v1194, %v1195
  %v1197 = vshll.u32 920167782, %v1182
  %v1198 = vshrl.u32 1326507024, %v1183
  %v1199 = vor.u32 %v1197, %v1198
  %vm1200 = vcmp.lt.s32.totalorder %v1181, 1
  %vm1201 = vcmp.lt.s32.totalorder %v1181, 2
  %vm1202 = vcmp.lt.s32.totalorder %v1181, 3
  %vm1203 = vcmp.lt.s32.totalorder %v1181, 4
  %v1204 = vsel %vm1200, %v1184, %v1187
  %v1205 = vsel %vm1203, %v1193, 2102212464
  %v1206 = vsel %vm1202, %v1190, %v1205
  %v1207 = vsel %vm1201, %v1204, %v1206
  %v1208 = vsel %vm1200, %v1187, %v1190
  %v1209 = vsel %vm1203, %v1196, 920167782
  %v1210 = vsel %vm1202, %v1193, %v1209
  %v1211 = vsel %vm1201, %v1208, %v1210
  %v1212 = vsel %vm1200, %v1190, %v1193
  %v1213 = vsel %vm1203, %v1199, 1326507024
  %v1214 = vsel %vm1202, %v1196, %v1213
  %v1215 = vsel %vm1201, %v1212, %v1214
  %v1216 = vshll.u32 %v1176, 8
  %v1217 = vmul.u32.u64.compose %v1216, %v1215
  %v1218 = vextract.low.u32 %v1217
  %v1219 = vextract.high.u32 %v1217
  %v1220 = vmul.u32.u64.compose %v1216, %v1211
  %v1221 = vextract.low.u32 %v1220
  %v1222 = vextract.high.u32 %v1220
  %v1223 = vmul.u32 %v1216, %v1207
  %v1224 = vadd.s32 %v1219, %v1221
  %vm1225 = vc.u32 %v1219, %v1221
  %v1226 = vadd.s32 %v1222, 1
  %v1227 = vsel %vm1225, %v1226, %v1222
  %v1228 = vadd.s32 %v1223, %v1227
  %v1229 = vadd.s32 %v1228, 536870912
  %v1230 = vshrl.u32 %v1229, 30
  %v1231 = vshll.u32 %v1230, 30
  %v1232 = vsub.s32 %v1228, %v1231
  %vm1233 = vcmp.lt.s32.totalorder %v1232, 0
  %v1234 = vsub.s32 0, %v1232
  %v1235 = vsel %vm1233, %v1234, %v1232
  %v1236 = vclz %v1235
  %v1237 = vsub.s32 %v1236, 2
  %vm1238 = vcmp.gt.s32.totalorder 0, %v1237
  %v1239 = vsel %vm1238, 0, %v1237
  %v1240 = vsub.s32 32, %v1239
  %v1241 = vshll.u32 %v1232, %v1239
  %v1242 = vshrl.u32 %v1224, %v1240
  %v1243 = vor.u32 %v1241, %v1242
  %v1244 = vsub.s32 4294967266, %v1239
  %v1245 = vadd.s32 %v1244, 127
  %v1246 = vshll.u32 %v1245, 23
  %v1247 = vor.u32 4788187, %v1246
  %v1248 = vand.u32 2147483647, %v1247
  %v1250 = vcvt.s32.f32 %v1243
  %v1251 = vmul.f32 %v1250, %v1248
  %v1252 = vxor.u32 %v1251, 2147483648
  %v1253 = vsel %vm1170, %v1252, %v1251
  %v1254 = vsub.s32 4, %v1230
  %v1255 = vsel %vm1170, %v1254, %v1230
  %v1256 = vsel %vm1169, %v1061, %v1253
  %v1257 = vsel %vm1169, 0, %v1255
  %v1258 = vcosq.f32.pop %v1256
  %v1259 = vsinq.f32.pop %v1256
  %vm1260 = vweird.f32 %v1061
  %v1261 = vadd.s32 %v1257, 3
  %v1262 = vand.u32 %v1261, 3
  %vm1263 = vcmp.lt.s32.totalorder %v1262, 2
  %vm1264 = vcmp.eq.s32.totalorder %v1262, 0
  %v1265 = vxor.u32 %v1259, 2147483648
  %v1266 = vsel %vm1264, %v1258, %v1265
  %vm1267 = vcmp.eq.s32.totalorder %v1262, 2
  %v1268 = vxor.u32 %v1258, 2147483648
  %v1269 = vsel %vm1267, %v1268, %v1259
  %v1270 = vsel %vm1263, %v1266, %v1269
  %v1271 = vsel %vm1260, nan, %v1270
  %v1272 = vand.u32 2147483647, %v1062
  %vm1273 = vcmp.le.f32.partialorder %v1272, 0.7853982
  %vm1274 = vcmp.lt.s32.totalorder %v1062, 0
  %v1275 = vand.u32 %v1062, 2139095040
  %v1276 = vshrl.u32 %v1275, 23
  %v1277 = vsub.s32 %v1276, 127
  %v1278 = vand.u32 2147483647, %v1062
  %v1279 = vand.u32 %v1278, 8388607
  %v1280 = vor.u32 %v1279, 8388608
  %v1281 = vsub.s32 0, %v1280
  %v1282 = vadd.s32 %v1277, 1
  %vm1283 = vcmp.gt.s32.totalorder %v1282, 0
  %v1284 = vsel %vm1283, %v1282, 0
  %v1285 = vshrl.u32 %v1284, 5
  %v1286 = vand.u32 %v1284, 31
  %v1287 = vsub.s32 32, %v1286
  %v1288 = vshrl.u32 683565275, %v1287
  %v1289 = vshll.u32 683565275, %v1286
  %v1290 = vshrl.u32 2475754826, %v1287
  %v1291 = vor.u32 %v1289, %v1290
  %v1292 = vshll.u32 2475754826, %v1286
  %v1293 = vshrl.u32 2131351028, %v1287
  %v1294 = vor.u32 %v1292, %v1293
  %v1295 = vshll.u32 2131351028, %v1286
  %v1296 = vshrl.u32 2102212464, %v1287
  %v1297 = vor.u32 %v1295, %v1296
  %v1298 = vshll.u32 2102212464, %v1286
  %v1299 = vshrl.u32 920167782, %v1287
  %v1300 = vor.u32 %v1298, %v1299
  %v1301 = vshll.u32 920167782, %v1286
  %v1302 = vshrl.u32 1326507024, %v1287
  %v1303 = vor.u32 %v1301, %v1302
  %vm1304 = vcmp.lt.s32.totalorder %v1285, 1
  %vm1305 = vcmp.lt.s32.totalorder %v1285, 2
  %vm1306 = vcmp.lt.s32.totalorder %v1285, 3
  %vm1307 = vcmp.lt.s32.totalorder %v1285, 4
  %v1308 = vsel %vm1304, %v1288, %v1291
  %v1309 = vsel %vm1307, %v1297, 2102212464
  %v1310 = vsel %vm1306, %v1294, %v1309
  %v1311 = vsel %vm1305, %v1308, %v1310
  %v1312 = vsel %vm1304, %v1291, %v1294
  %v1313 = vsel %vm1307, %v1300, 920167782
  %v1314 = vsel %vm1306, %v1297, %v1313
  %v1315 = vsel %vm1305, %v1312, %v1314
  %v1316 = vsel %vm1304, %v1294, %v1297
  %v1317 = vsel %vm1307, %v1303, 1326507024
  %v1318 = vsel %vm1306, %v1300, %v1317
  %v1319 = vsel %vm1305, %v1316, %v1318
  %v1320 = vshll.u32 %v1280, 8
  %v1321 = vmul.u32.u64.compose %v1320, %v1319
  %v1322 = vextract.low.u32 %v1321
  %v1323 = vextract.high.u32 %v1321
  %v1324 = vmul.u32.u64.compose %v1320, %v1315
  %v1325 = vextract.low.u32 %v1324
  %v1326 = vextract.high.u32 %v1324
  %v1327 = vmul.u32 %v1320, %v1311
  %v1328 = vadd.s32 %v1323, %v1325
  %vm1329 = vc.u32 %v1323, %v1325
  %v1330 = vadd.s32 %v1326, 1
  %v1331 = vsel %vm1329, %v1330, %v1326
  %v1332 = vadd.s32 %v1327, %v1331
  %v1333 = vadd.s32 %v1332, 536870912
  %v1334 = vshrl.u32 %v1333, 30
  %v1335 = vshll.u32 %v1334, 30
  %v1336 = vsub.s32 %v1332, %v1335
  %vm1337 = vcmp.lt.s32.totalorder %v1336, 0
  %v1338 = vsub.s32 0, %v1336
  %v1339 = vsel %vm1337, %v1338, %v1336
  %v1340 = vclz %v1339
  %v1341 = vsub.s32 %v1340, 2
  %vm1342 = vcmp.gt.s32.totalorder 0, %v1341
  %v1343 = vsel %vm1342, 0, %v1341
  %v1344 = vsub.s32 32, %v1343
  %v1345 = vshll.u32 %v1336, %v1343
  %v1346 = vshrl.u32 %v1328, %v1344
  %v1347 = vor.u32 %v1345, %v1346
  %v1348 = vsub.s32 4294967266, %v1343
  %v1349 = vadd.s32 %v1348, 127
  %v1350 = vshll.u32 %v1349, 23
  %v1351 = vor.u32 4788187, %v1350
  %v1352 = vand.u32 2147483647, %v1351
  %v1354 = vcvt.s32.f32 %v1347
  %v1355 = vmul.f32 %v1354, %v1352
  %v1356 = vxor.u32 %v1355, 2147483648
  %v1357 = vsel %vm1274, %v1356, %v1355
  %v1358 = vsub.s32 4, %v1334
  %v1359 = vsel %vm1274, %v1358, %v1334
  %v1360 = vsel %vm1273, %v1062, %v1357
  %v1361 = vsel %vm1273, 0, %v1359
  %v1362 = vcosq.f32.pop %v1360
  %v1363 = vsinq.f32.pop %v1360
  %vm1364 = vweird.f32 %v1062
  %v1365 = vadd.s32 %v1361, 3
  %v1366 = vand.u32 %v1365, 3
  %vm1367 = vcmp.lt.s32.totalorder %v1366, 2
  %vm1368 = vcmp.eq.s32.totalorder %v1366, 0
  %v1369 = vxor.u32 %v1363, 2147483648
  %v1370 = vsel %vm1368, %v1362, %v1369
  %vm1371 = vcmp.eq.s32.totalorder %v1366, 2
  %v1372 = vxor.u32 %v1362, 2147483648
  %v1373 = vsel %vm1371, %v1372, %v1363
  %v1374 = vsel %vm1367, %v1370, %v1373
  %v1375 = vsel %vm1364, nan, %v1374
  %v1376 = vand.u32 2147483647, %v1063
  %vm1377 = vcmp.le.f32.partialorder %v1376, 0.7853982
  %vm1378 = vcmp.lt.s32.totalorder %v1063, 0
  %v1379 = vand.u32 %v1063, 2139095040
  %v1380 = vshrl.u32 %v1379, 23
  %v1381 = vsub.s32 %v1380, 127
  %v1382 = vand.u32 2147483647, %v1063
  %v1383 = vand.u32 %v1382, 8388607
  %v1384 = vor.u32 %v1383, 8388608
  %v1385 = vsub.s32 0, %v1384
  %v1386 = vadd.s32 %v1381, 1
  %vm1387 = vcmp.gt.s32.totalorder %v1386, 0
  %v1388 = vsel %vm1387, %v1386, 0
  %v1389 = vshrl.u32 %v1388, 5
  %v1390 = vand.u32 %v1388, 31
  %v1391 = vsub.s32 32, %v1390
  %v1392 = vshrl.u32 683565275, %v1391
  %v1393 = vshll.u32 683565275, %v1390
  %v1394 = vshrl.u32 2475754826, %v1391
  %v1395 = vor.u32 %v1393, %v1394
  %v1396 = vshll.u32 2475754826, %v1390
  %v1397 = vshrl.u32 2131351028, %v1391
  %v1398 = vor.u32 %v1396, %v1397
  %v1399 = vshll.u32 2131351028, %v1390
  %v1400 = vshrl.u32 2102212464, %v1391
  %v1401 = vor.u32 %v1399, %v1400
  %v1402 = vshll.u32 2102212464, %v1390
  %v1403 = vshrl.u32 920167782, %v1391
  %v1404 = vor.u32 %v1402, %v1403
  %v1405 = vshll.u32 920167782, %v1390
  %v1406 = vshrl.u32 1326507024, %v1391
  %v1407 = vor.u32 %v1405, %v1406
  %vm1408 = vcmp.lt.s32.totalorder %v1389, 1
  %vm1409 = vcmp.lt.s32.totalorder %v1389, 2
  %vm1410 = vcmp.lt.s32.totalorder %v1389, 3
  %vm1411 = vcmp.lt.s32.totalorder %v1389, 4
  %v1412 = vsel %vm1408, %v1392, %v1395
  %v1413 = vsel %vm1411, %v1401, 2102212464
  %v1414 = vsel %vm1410, %v1398, %v1413
  %v1415 = vsel %vm1409, %v1412, %v1414
  %v1416 = vsel %vm1408, %v1395, %v1398
  %v1417 = vsel %vm1411, %v1404, 920167782
  %v1418 = vsel %vm1410, %v1401, %v1417
  %v1419 = vsel %vm1409, %v1416, %v1418
  %v1420 = vsel %vm1408, %v1398, %v1401
  %v1421 = vsel %vm1411, %v1407, 1326507024
  %v1422 = vsel %vm1410, %v1404, %v1421
  %v1423 = vsel %vm1409, %v1420, %v1422
  %v1424 = vshll.u32 %v1384, 8
  %v1425 = vmul.u32.u64.compose %v1424, %v1423
  %v1426 = vextract.low.u32 %v1425
  %v1427 = vextract.high.u32 %v1425
  %v1428 = vmul.u32.u64.compose %v1424, %v1419
  %v1429 = vextract.low.u32 %v1428
  %v1430 = vextract.high.u32 %v1428
  %v1431 = vmul.u32 %v1424, %v1415
  %v1432 = vadd.s32 %v1427, %v1429
  %vm1433 = vc.u32 %v1427, %v1429
  %v1434 = vadd.s32 %v1430, 1
  %v1435 = vsel %vm1433, %v1434, %v1430
  %v1436 = vadd.s32 %v1431, %v1435
  %v1437 = vadd.s32 %v1436, 536870912
  %v1438 = vshrl.u32 %v1437, 30
  %v1439 = vshll.u32 %v1438, 30
  %v1440 = vsub.s32 %v1436, %v1439
  %vm1441 = vcmp.lt.s32.totalorder %v1440, 0
  %v1442 = vsub.s32 0, %v1440
  %v1443 = vsel %vm1441, %v1442, %v1440
  %v1444 = vclz %v1443
  %v1445 = vsub.s32 %v1444, 2
  %vm1446 = vcmp.gt.s32.totalorder 0, %v1445
  %v1447 = vsel %vm1446, 0, %v1445
  %v1448 = vsub.s32 32, %v1447
  %v1449 = vshll.u32 %v1440, %v1447
  %v1450 = vshrl.u32 %v1432, %v1448
  %v1451 = vor.u32 %v1449, %v1450
  %v1452 = vsub.s32 4294967266, %v1447
  %v1453 = vadd.s32 %v1452, 127
  %v1454 = vshll.u32 %v1453, 23
  %v1455 = vor.u32 4788187, %v1454
  %v1456 = vand.u32 2147483647, %v1455
  %v1458 = vcvt.s32.f32 %v1451
  %v1459 = vmul.f32 %v1458, %v1456
  %v1460 = vxor.u32 %v1459, 2147483648
  %v1461 = vsel %vm1378, %v1460, %v1459
  %v1462 = vsub.s32 4, %v1438
  %v1463 = vsel %vm1378, %v1462, %v1438
  %v1464 = vsel %vm1377, %v1063, %v1461
  %v1465 = vsel %vm1377, 0, %v1463
  %v1466 = vcosq.f32.pop %v1464
  %v1467 = vsinq.f32.pop %v1464
  %vm1468 = vweird.f32 %v1063
  %v1469 = vadd.s32 %v1465, 3
  %v1470 = vand.u32 %v1469, 3
  %vm1471 = vcmp.lt.s32.totalorder %v1470, 2
  %vm1472 = vcmp.eq.s32.totalorder %v1470, 0
  %v1473 = vxor.u32 %v1467, 2147483648
  %v1474 = vsel %vm1472, %v1466, %v1473
  %vm1475 = vcmp.eq.s32.totalorder %v1470, 2
  %v1476 = vxor.u32 %v1466, 2147483648
  %v1477 = vsel %vm1475, %v1476, %v1467
  %v1478 = vsel %vm1471, %v1474, %v1477
  %v1479 = vsel %vm1468, nan, %v1478
  %1480 = vst [vmem:[%s4] sm:$0xff] %v1167
  %1481 = vst [vmem:[%s4 + $0x8] sm:$0xff] %v1271
  %1482 = vst [vmem:[%s4 + $0x10] sm:$0xff] %v1375
  %1483 = vst [vmem:[%s4 + $0x18] sm:$0xff] %v1479
  // Predicated region
  $region18: #{sinusoidal_embedding.1} parent=0 // pred_check
    _
  $region19: #{sinusoidal_embedding.1} parent=0 // pred_check_branch
    %1485 = sbr.rel (0) target = $region21
  $region20: #{sinusoidal_embedding.1} parent=0 // pred_region
    _
  $region21: #{sinusoidal_embedding.1} parent=0 // pred_fallthru
    _
  // Predicated region
  $region22: #{sinusoidal_embedding.1} parent=0 // pred_check
    _
  $region23: #{sinusoidal_embedding.1} parent=0 // pred_check_branch
    %1487 = sbr.rel (0) target = $region25
  $region24: #{sinusoidal_embedding.1} parent=0 // pred_region
    _
  $region25: #{sinusoidal_embedding.1} parent=0 // pred_fallthru
    _

</llo_original>
